<compile_context>
chip_gen: v7x
topology: tpu7x:2x2x1
jax: 0.10.0
libtpu: 0.0.40
codegen_flags: <defaults>
</compile_context>

<pallas_src>
import math
import jax
import jax.numpy as jnp
from jax import lax
from jax.experimental import pallas as pl
from jax.experimental.pallas import tpu as pltpu

# ---------------- config (small, consistent with the module) ----------------
B = 2        # batch
T = 8        # sequence length
C = 32       # n_embd
NH = 4       # n_head
HD = C // NH # head dim
EPS = 1e-5


def _layernorm(x, g, b):
    mu = jnp.mean(x, axis=-1, keepdims=True)
    var = jnp.mean((x - mu) * (x - mu), axis=-1, keepdims=True)
    return (x - mu) * lax.rsqrt(var + EPS) * g + b


def _gelu_tanh(x):
    # nn.GELU(approximate='tanh')
    c = math.sqrt(2.0 / math.pi)
    return 0.5 * x * (1.0 + jnp.tanh(c * (x + 0.044715 * x * x * x)))


def block_kernel(x_ref,
                 ln1_g_ref, ln1_b_ref,
                 w_qkv_ref, b_qkv_ref,
                 w_aproj_ref, b_aproj_ref,
                 ln2_g_ref, ln2_b_ref,
                 w_fc_ref, b_fc_ref,
                 w_mproj_ref, b_mproj_ref,
                 out_ref):
    x = x_ref[...]                                   # (T, C) f32, one batch
    t, c = x.shape
    nh = w_qkv_ref.shape[0]
    hd = c // nh

    # ---- ln_1 + causal self-attention (head-batched, head dim leading) ----
    xn = _layernorm(x, ln1_g_ref[...], ln1_b_ref[...])
    xb = jnp.broadcast_to(xn.astype(jnp.bfloat16)[None, :, :], (nh, t, c))
    # 1/sqrt(HD) is already folded into the Q columns of w_qkv / b_qkv.
    qkv = jnp.einsum('htc,hck->htk', xb, w_qkv_ref[...],
                     preferred_element_type=jnp.float32) + b_qkv_ref[...]   # (NH,T,3HD)
    q = qkv[:, :, 0 * hd:1 * hd].astype(jnp.bfloat16)
    k = qkv[:, :, 1 * hd:2 * hd].astype(jnp.bfloat16)
    v = qkv[:, :, 2 * hd:3 * hd].astype(jnp.bfloat16)

    # bf16 operands, f32 accumulation; scores / mask / softmax stay f32.
    s = jnp.einsum('hqd,hkd->hqk', q, k,
                   preferred_element_type=jnp.float32)                      # (NH,T,T)
    qpos = lax.broadcasted_iota(jnp.int32, (nh, t, t), 1)
    kpos = lax.broadcasted_iota(jnp.int32, (nh, t, t), 2)
    s = jnp.where(kpos <= qpos, s, -1e30)            # in-kernel causal mask

    m = jnp.max(s, axis=-1, keepdims=True)
    p = jnp.exp(s - m)                               # unnormalized weights
    l = jnp.sum(p, axis=-1, keepdims=True)
    y = jnp.einsum('hqk,hkd->hqd', p.astype(jnp.bfloat16), v,
                   preferred_element_type=jnp.float32)                      # (NH,T,HD)
    y = y * pl.reciprocal(l, approx=True)            # deferred softmax norm (EUP)

    attn = jnp.einsum('hqd,hdc->hqc', y.astype(jnp.bfloat16), w_aproj_ref[...],
                      preferred_element_type=jnp.float32)                   # (NH,T,C)
    attn = jnp.sum(attn, axis=0) + b_aproj_ref[...]  # (T, C)
    x1 = x + attn

    # ---- ln_2 + MLP (GELU tanh) ----
    xn2 = _layernorm(x1, ln2_g_ref[...], ln2_b_ref[...])
    h1 = jnp.dot(xn2.astype(jnp.bfloat16), w_fc_ref[...],
                 preferred_element_type=jnp.float32) + b_fc_ref[...]
    h1 = _gelu_tanh(h1)
    mlp_out = jnp.dot(h1.astype(jnp.bfloat16), w_mproj_ref[...],
                      preferred_element_type=jnp.float32) + b_mproj_ref[...]

    out_ref[...] = x1 + mlp_out


def gpt2_block(x, params):
    (ln1_g, ln1_b, w_attn, b_attn, w_aproj, b_aproj,
     ln2_g, ln2_b, w_fc, b_fc, w_mproj, b_mproj) = params

    bb, tt, cc = x.shape
    nh = NH
    hd = cc // nh

    # Fold the 1/sqrt(HD) attention scale into the Q slice of c_attn once.
    scale = 1.0 / math.sqrt(hd)
    w_attn_f = w_attn.at[:, :cc].multiply(scale)
    b_attn_f = b_attn.at[:, :cc].multiply(scale)

    # Head-major weight reorganization (done once, wrapper-side by XLA):
    #   c_attn:  (C, 3C)  -> (NH, C, 3*HD)  columns per head = [Q | K | V]
    #   bias:    (1, 3C)  -> (NH, 1, 3*HD)
    #   c_proj:  (C, C)   -> (NH, HD, C)    rows are head-major
    w_qkv = (w_attn_f.reshape(cc, 3, nh, hd)
             .transpose(2, 0, 1, 3)
             .reshape(nh, cc, 3 * hd)).astype(jnp.bfloat16)
    b_qkv = (b_attn_f.reshape(3, nh, hd)
             .transpose(1, 0, 2)
             .reshape(nh, 1, 3 * hd)).astype(jnp.float32)
    w_aproj_h = w_aproj.reshape(nh, hd, cc).astype(jnp.bfloat16)

    # bf16 operands for the dense MXU matmuls (accumulation stays f32).
    w_fc_bf = w_fc.astype(jnp.bfloat16)
    w_mproj_bf = w_mproj.astype(jnp.bfloat16)

    # Advisory cost estimate for XLA's scheduler.
    flops = 2 * bb * (tt * cc * 3 * cc          # qkv projection
                      + 2 * nh * tt * tt * hd   # QK^T + PV
                      + tt * cc * cc            # attn c_proj
                      + 2 * tt * cc * 4 * cc)   # c_fc + mlp c_proj
    transcendentals = bb * (nh * tt * tt + tt * 4 * cc + nh * tt + 2 * tt)
    bytes_accessed = int(
        2 * x.size * 4
        + (w_qkv.size + w_aproj_h.size + w_fc_bf.size + w_mproj_bf.size) * 2
        + (b_qkv.size + b_aproj.size + b_fc.size + b_mproj.size
           + ln1_g.size + ln1_b.size + ln2_g.size + ln2_b.size) * 4)

    out = pl.pallas_call(
        block_kernel,
        grid=(bb,),
        in_specs=[
            pl.BlockSpec((None, tt, cc), lambda b: (b, 0, 0)),      # x (one batch)
            pl.BlockSpec((1, cc), lambda b: (0, 0)),                # ln1_g
            pl.BlockSpec((1, cc), lambda b: (0, 0)),                # ln1_b
            pl.BlockSpec((nh, cc, 3 * hd), lambda b: (0, 0, 0)),    # w_qkv  (bf16)
            pl.BlockSpec((nh, 1, 3 * hd), lambda b: (0, 0, 0)),     # b_qkv
            pl.BlockSpec((nh, hd, cc), lambda b: (0, 0, 0)),        # w_aproj (bf16)
            pl.BlockSpec((1, cc), lambda b: (0, 0)),                # b_aproj
            pl.BlockSpec((1, cc), lambda b: (0, 0)),                # ln2_g
            pl.BlockSpec((1, cc), lambda b: (0, 0)),                # ln2_b
            pl.BlockSpec((cc, 4 * cc), lambda b: (0, 0)),           # w_fc   (bf16)
            pl.BlockSpec((1, 4 * cc), lambda b: (0, 0)),            # b_fc
            pl.BlockSpec((4 * cc, cc), lambda b: (0, 0)),           # w_mproj (bf16)
            pl.BlockSpec((1, cc), lambda b: (0, 0)),                # b_mproj
        ],
        out_specs=pl.BlockSpec((None, tt, cc), lambda b: (b, 0, 0)),
        out_shape=jax.ShapeDtypeStruct((bb, tt, cc), jnp.float32),
        compiler_params=pltpu.CompilerParams(
            dimension_semantics=("parallel",)),
        cost_estimate=pl.CostEstimate(flops=flops,
                                      transcendentals=transcendentals,
                                      bytes_accessed=bytes_accessed),
    )(x, ln1_g, ln1_b, w_qkv, b_qkv, w_aproj_h, b_aproj,
      ln2_g, ln2_b, w_fc_bf, b_fc, w_mproj_bf, b_mproj)

    return out


# ------------------------- pure-JAX reference -------------------------------
def reference_block(x, params):
    (ln1_g, ln1_b, w_attn, b_attn, w_aproj, b_aproj,
     ln2_g, ln2_b, w_fc, b_fc, w_mproj, b_mproj) = params

    def ln(v, g, b):
        mu = jnp.mean(v, -1, keepdims=True)
        var = jnp.mean((v - mu) ** 2, -1, keepdims=True)
        return (v - mu) / jnp.sqrt(var + EPS) * g + b

    xn = ln(x, ln1_g[0], ln1_b[0])
    qkv = xn @ w_attn + b_attn[0]
    q, k, v = jnp.split(qkv, 3, axis=-1)
    q = q.reshape(B, T, NH, HD).transpose(0, 2, 1, 3)
    k = k.reshape(B, T, NH, HD).transpose(0, 2, 1, 3)
    v = v.reshape(B, T, NH, HD).transpose(0, 2, 1, 3)
    s = jnp.einsum('bhqd,bhkd->bhqk', q, k) / math.sqrt(HD)
    mask = jnp.tril(jnp.ones((T, T), bool))
    s = jnp.where(mask, s, -jnp.inf)
    p = jax.nn.softmax(s, axis=-1)
    y = jnp.einsum('bhqk,bhkd->bhqd', p, v).transpose(0, 2, 1, 3).reshape(B, T, C)
    x1 = x + (y @ w_aproj + b_aproj[0])
    xn2 = ln(x1, ln2_g[0], ln2_b[0])
    h = xn2 @ w_fc + b_fc[0]
    cst = math.sqrt(2.0 / math.pi)
    h = 0.5 * h * (1.0 + jnp.tanh(cst * (h + 0.044715 * h ** 3)))
    return x1 + (h @ w_mproj + b_mproj[0])


if __name__ == "__main__":
    key = jax.random.PRNGKey(0)
    ks = jax.random.split(key, 8)

    x = jax.random.normal(ks[0], (B, T, C), jnp.float32)

    # deterministic synthetic parameters (nn.Linear weights stored as [in, out])
    ln1_g = jnp.ones((1, C), jnp.float32)
    ln1_b = jnp.zeros((1, C), jnp.float32)
    w_attn = 0.02 * jax.random.normal(ks[1], (C, 3 * C), jnp.float32)
    b_attn = jnp.zeros((1, 3 * C), jnp.float32)
    w_aproj = 0.02 * jax.random.normal(ks[2], (C, C), jnp.float32)
    b_aproj = jnp.zeros((1, C), jnp.float32)
    ln2_g = jnp.ones((1, C), jnp.float32)
    ln2_b = jnp.zeros((1, C), jnp.float32)
    w_fc = 0.02 * jax.random.normal(ks[3], (C, 4 * C), jnp.float32)
    b_fc = jnp.zeros((1, 4 * C), jnp.float32)
    w_mproj = 0.02 * jax.random.normal(ks[4], (4 * C, C), jnp.float32)
    b_mproj = jnp.zeros((1, C), jnp.float32)

    params = (ln1_g, ln1_b, w_attn, b_attn, w_aproj, b_aproj,
              ln2_g, ln2_b, w_fc, b_fc, w_mproj, b_mproj)

    out = gpt2_block(x, params)
    out = jax.block_until_ready(out)

    ref = reference_block(x, params)
    # Tolerance covers bf16 MXU operands (dense + attention einsums) and the
    # approx EUP reciprocal vs the all-f32 reference (observed error O(1e-4)
    # on O(1) outputs).
    assert jnp.allclose(out, ref, atol=3e-3, rtol=3e-3), "mismatch vs reference"

    print("KERNEL_OK")
</pallas_src>

<mosaic_0001>
module attributes {stable_mosaic.version = 11 : i64} {
  func.func @block_kernel(%arg0: i32, %arg1: memref<1x8x32xf32, #tpu.memory_space<vmem>>, %arg2: memref<1x32xf32, #tpu.memory_space<vmem>>, %arg3: memref<1x32xf32, #tpu.memory_space<vmem>>, %arg4: memref<4x32x24xbf16, #tpu.memory_space<vmem>>, %arg5: memref<4x1x24xf32, #tpu.memory_space<vmem>>, %arg6: memref<4x8x32xbf16, #tpu.memory_space<vmem>>, %arg7: memref<1x32xf32, #tpu.memory_space<vmem>>, %arg8: memref<1x32xf32, #tpu.memory_space<vmem>>, %arg9: memref<1x32xf32, #tpu.memory_space<vmem>>, %arg10: memref<32x128xbf16, #tpu.memory_space<vmem>>, %arg11: memref<1x128xf32, #tpu.memory_space<vmem>>, %arg12: memref<128x32xbf16, #tpu.memory_space<vmem>>, %arg13: memref<1x32xf32, #tpu.memory_space<vmem>>, %arg14: memref<1x8x32xf32, #tpu.memory_space<vmem>>) attributes {dimension_semantics = [#tpu.dimension_semantics<parallel>], iteration_bounds = array<i64: 2>, scalar_prefetch = 0 : i64, scratch_operands = 0 : i64, tpu.core_type = #tpu.core_type<tc>, window_params = [{transform_indices = @transform_0, window_bounds = array<i64: 1, 8, 32>}, {pipeline_mode = #tpu.pipeline_mode<synchronous>, transform_indices = @transform_1, window_bounds = array<i64: 1, 32>}, {pipeline_mode = #tpu.pipeline_mode<synchronous>, transform_indices = @transform_2, window_bounds = array<i64: 1, 32>}, {pipeline_mode = #tpu.pipeline_mode<synchronous>, transform_indices = @transform_3, window_bounds = array<i64: 4, 32, 24>}, {pipeline_mode = #tpu.pipeline_mode<synchronous>, transform_indices = @transform_4, window_bounds = array<i64: 4, 1, 24>}, {pipeline_mode = #tpu.pipeline_mode<synchronous>, transform_indices = @transform_5, window_bounds = array<i64: 4, 8, 32>}, {pipeline_mode = #tpu.pipeline_mode<synchronous>, transform_indices = @transform_6, window_bounds = array<i64: 1, 32>}, {pipeline_mode = #tpu.pipeline_mode<synchronous>, transform_indices = @transform_7, window_bounds = array<i64: 1, 32>}, {pipeline_mode = #tpu.pipeline_mode<synchronous>, transform_indices = @transform_8, window_bounds = array<i64: 1, 32>}, {pipeline_mode = #tpu.pipeline_mode<synchronous>, transform_indices = @transform_9, window_bounds = array<i64: 32, 128>}, {pipeline_mode = #tpu.pipeline_mode<synchronous>, transform_indices = @transform_10, window_bounds = array<i64: 1, 128>}, {pipeline_mode = #tpu.pipeline_mode<synchronous>, transform_indices = @transform_11, window_bounds = array<i64: 128, 32>}, {pipeline_mode = #tpu.pipeline_mode<synchronous>, transform_indices = @transform_12, window_bounds = array<i64: 1, 32>}, {transform_indices = @transform_13, window_bounds = array<i64: 1, 8, 32>}]} {
    %c0 = arith.constant 0 : index
    %c0_0 = arith.constant 0 : index
    %c0_1 = arith.constant 0 : index
    %0 = vector.load %arg1[%c0, %c0_0, %c0_1] : memref<1x8x32xf32, #tpu.memory_space<vmem>>, vector<1x8x32xf32>
    %1 = vector.shape_cast %0 : vector<1x8x32xf32> to vector<8x32xf32>
    %c0_2 = arith.constant 0 : index
    %c0_3 = arith.constant 0 : index
    %2 = vector.load %arg2[%c0_2, %c0_3] : memref<1x32xf32, #tpu.memory_space<vmem>>, vector<1x32xf32>
    %c0_4 = arith.constant 0 : index
    %c0_5 = arith.constant 0 : index
    %3 = vector.load %arg3[%c0_4, %c0_5] : memref<1x32xf32, #tpu.memory_space<vmem>>, vector<1x32xf32>
    %cst = arith.constant dense<0.000000e+00> : vector<8xf32>
    %4 = vector.multi_reduction <add>, %1, %cst [1] : vector<8x32xf32> to vector<8xf32>
    %5 = vector.shape_cast %4 : vector<8xf32> to vector<8x1xf32>
    %cst_6 = arith.constant 3.200000e+01 : f32
    %6 = vector.broadcast %cst_6 : f32 to vector<8x1xf32>
    %7 = arith.divf %5, %6 : vector<8x1xf32>
    %8 = vector.broadcast %7 : vector<8x1xf32> to vector<8x32xf32>
    %9 = arith.subf %1, %8 : vector<8x32xf32>
    %10 = vector.broadcast %7 : vector<8x1xf32> to vector<8x32xf32>
    %11 = arith.subf %1, %10 : vector<8x32xf32>
    %12 = arith.mulf %9, %11 : vector<8x32xf32>
    %cst_7 = arith.constant dense<0.000000e+00> : vector<8xf32>
    %13 = vector.multi_reduction <add>, %12, %cst_7 [1] : vector<8x32xf32> to vector<8xf32>
    %14 = vector.shape_cast %13 : vector<8xf32> to vector<8x1xf32>
    %cst_8 = arith.constant 3.200000e+01 : f32
    %15 = vector.broadcast %cst_8 : f32 to vector<8x1xf32>
    %16 = arith.divf %14, %15 : vector<8x1xf32>
    %17 = vector.broadcast %7 : vector<8x1xf32> to vector<8x32xf32>
    %18 = arith.subf %1, %17 : vector<8x32xf32>
    %cst_9 = arith.constant 9.99999974E-6 : f32
    %19 = vector.broadcast %cst_9 : f32 to vector<8x1xf32>
    %20 = arith.addf %16, %19 : vector<8x1xf32>
    %21 = math.rsqrt %20 : vector<8x1xf32>
    %22 = vector.broadcast %21 : vector<8x1xf32> to vector<8x32xf32>
    %23 = arith.mulf %18, %22 : vector<8x32xf32>
    %24 = vector.broadcast %2 : vector<1x32xf32> to vector<8x32xf32>
    %25 = arith.mulf %23, %24 : vector<8x32xf32>
    %26 = vector.broadcast %3 : vector<1x32xf32> to vector<8x32xf32>
    %27 = arith.addf %25, %26 : vector<8x32xf32>
    %28 = arith.truncf %27 : vector<8x32xf32> to vector<8x32xbf16>
    %29 = vector.shape_cast %28 : vector<8x32xbf16> to vector<1x8x32xbf16>
    %30 = vector.shape_cast %29 : vector<1x8x32xbf16> to vector<1x8x32xbf16>
    %31 = vector.broadcast %30 : vector<1x8x32xbf16> to vector<4x8x32xbf16>
    %c0_10 = arith.constant 0 : index
    %c0_11 = arith.constant 0 : index
    %c0_12 = arith.constant 0 : index
    %32 = vector.load %arg4[%c0_10, %c0_11, %c0_12] : memref<4x32x24xbf16, #tpu.memory_space<vmem>>, vector<4x32x24xbf16>
    "tpu.trace_start"() <{level = 10 : i32, message = "htc,hck->htk"}> : () -> ()
    %cst_13 = arith.constant dense<0.000000e+00> : vector<4x8x24xf32>
    %33 = tpu.matmul %31, %32, %cst_13 {dimension_numbers = #tpu.dot_dimension_numbers<[2], [1], [1], [2], [0, 0, 0, 1, 1, 2], [0], [0]>} : vector<4x8x32xbf16>, vector<4x32x24xbf16>, vector<4x8x24xf32> -> vector<4x8x24xf32>
    "tpu.trace_stop"() : () -> ()
    %c0_14 = arith.constant 0 : index
    %c0_15 = arith.constant 0 : index
    %c0_16 = arith.constant 0 : index
    %34 = vector.load %arg5[%c0_14, %c0_15, %c0_16] : memref<4x1x24xf32, #tpu.memory_space<vmem>>, vector<4x1x24xf32>
    %35 = vector.broadcast %34 : vector<4x1x24xf32> to vector<4x8x24xf32>
    %36 = arith.addf %33, %35 : vector<4x8x24xf32>
    %37 = vector.extract_strided_slice %36 {offsets = [0, 0, 0], sizes = [4, 8, 8], strides = [1, 1, 1]} : vector<4x8x24xf32> to vector<4x8x8xf32>
    %38 = arith.truncf %37 : vector<4x8x8xf32> to vector<4x8x8xbf16>
    %39 = vector.extract_strided_slice %36 {offsets = [0, 0, 8], sizes = [4, 8, 8], strides = [1, 1, 1]} : vector<4x8x24xf32> to vector<4x8x8xf32>
    %40 = arith.truncf %39 : vector<4x8x8xf32> to vector<4x8x8xbf16>
    %41 = vector.extract_strided_slice %36 {offsets = [0, 0, 16], sizes = [4, 8, 8], strides = [1, 1, 1]} : vector<4x8x24xf32> to vector<4x8x8xf32>
    %42 = arith.truncf %41 : vector<4x8x8xf32> to vector<4x8x8xbf16>
    "tpu.trace_start"() <{level = 10 : i32, message = "hqd,hkd->hqk"}> : () -> ()
    %cst_17 = arith.constant dense<0.000000e+00> : vector<4x8x8xf32>
    %43 = tpu.matmul %38, %40, %cst_17 {dimension_numbers = #tpu.dot_dimension_numbers<[2], [2], [1], [1], [0, 0, 0, 1, 1, 1], [0], [0]>} : vector<4x8x8xbf16>, vector<4x8x8xbf16>, vector<4x8x8xf32> -> vector<4x8x8xf32>
    "tpu.trace_stop"() : () -> ()
    %44 = tpu.iota {dimensions = array<i32: 1>} : vector<4x8x8xi32>
    %45 = tpu.iota {dimensions = array<i32: 2>} : vector<4x8x8xi32>
    %46 = arith.cmpi sle, %45, %44 : vector<4x8x8xi32>
    %cst_18 = arith.constant -1.000000e+30 : f32
    %47 = vector.broadcast %cst_18 : f32 to vector<4x8x8xf32>
    %48 = arith.select %46, %43, %47 : vector<4x8x8xi1>, vector<4x8x8xf32>
    %cst_19 = arith.constant dense<0xFF800000> : vector<4x8xf32>
    %49 = vector.multi_reduction <maximumf>, %48, %cst_19 [2] : vector<4x8x8xf32> to vector<4x8xf32>
    %50 = vector.shape_cast %49 : vector<4x8xf32> to vector<4x8x1xf32>
    %51 = vector.broadcast %50 : vector<4x8x1xf32> to vector<4x8x8xf32>
    %52 = arith.subf %48, %51 : vector<4x8x8xf32>
    %53 = math.exp %52 : vector<4x8x8xf32>
    %cst_20 = arith.constant dense<0.000000e+00> : vector<4x8xf32>
    %54 = vector.multi_reduction <add>, %53, %cst_20 [2] : vector<4x8x8xf32> to vector<4x8xf32>
    %55 = vector.shape_cast %54 : vector<4x8xf32> to vector<4x8x1xf32>
    %56 = arith.truncf %53 : vector<4x8x8xf32> to vector<4x8x8xbf16>
    "tpu.trace_start"() <{level = 10 : i32, message = "hqk,hkd->hqd"}> : () -> ()
    %cst_21 = arith.constant dense<0.000000e+00> : vector<4x8x8xf32>
    %57 = tpu.matmul %56, %42, %cst_21 {dimension_numbers = #tpu.dot_dimension_numbers<[2], [1], [1], [2], [0, 0, 0, 1, 1, 2], [0], [0]>} : vector<4x8x8xbf16>, vector<4x8x8xbf16>, vector<4x8x8xf32> -> vector<4x8x8xf32>
    "tpu.trace_stop"() : () -> ()
    %58 = tpu.reciprocal %55 {approx = true} : vector<4x8x1xf32> -> vector<4x8x1xf32>
    %59 = vector.broadcast %58 : vector<4x8x1xf32> to vector<4x8x8xf32>
    %60 = arith.mulf %57, %59 : vector<4x8x8xf32>
    %61 = arith.truncf %60 : vector<4x8x8xf32> to vector<4x8x8xbf16>
    %c0_22 = arith.constant 0 : index
    %c0_23 = arith.constant 0 : index
    %c0_24 = arith.constant 0 : index
    %62 = vector.load %arg6[%c0_22, %c0_23, %c0_24] : memref<4x8x32xbf16, #tpu.memory_space<vmem>>, vector<4x8x32xbf16>
    "tpu.trace_start"() <{level = 10 : i32, message = "hqd,hdc->hqc"}> : () -> ()
    %cst_25 = arith.constant dense<0.000000e+00> : vector<4x8x32xf32>
    %63 = tpu.matmul %61, %62, %cst_25 {dimension_numbers = #tpu.dot_dimension_numbers<[2], [1], [1], [2], [0, 0, 0, 1, 1, 2], [0], [0]>} : vector<4x8x8xbf16>, vector<4x8x32xbf16>, vector<4x8x32xf32> -> vector<4x8x32xf32>
    "tpu.trace_stop"() : () -> ()
    %cst_26 = arith.constant dense<0.000000e+00> : vector<8x32xf32>
    %64 = vector.multi_reduction <add>, %63, %cst_26 [0] : vector<4x8x32xf32> to vector<8x32xf32>
    %c0_27 = arith.constant 0 : index
    %c0_28 = arith.constant 0 : index
    %65 = vector.load %arg7[%c0_27, %c0_28] : memref<1x32xf32, #tpu.memory_space<vmem>>, vector<1x32xf32>
    %66 = vector.broadcast %65 : vector<1x32xf32> to vector<8x32xf32>
    %67 = arith.addf %64, %66 : vector<8x32xf32>
    %68 = arith.addf %1, %67 : vector<8x32xf32>
    %c0_29 = arith.constant 0 : index
    %c0_30 = arith.constant 0 : index
    %69 = vector.load %arg8[%c0_29, %c0_30] : memref<1x32xf32, #tpu.memory_space<vmem>>, vector<1x32xf32>
    %c0_31 = arith.constant 0 : index
    %c0_32 = arith.constant 0 : index
    %70 = vector.load %arg9[%c0_31, %c0_32] : memref<1x32xf32, #tpu.memory_space<vmem>>, vector<1x32xf32>
    %cst_33 = arith.constant dense<0.000000e+00> : vector<8xf32>
    %71 = vector.multi_reduction <add>, %68, %cst_33 [1] : vector<8x32xf32> to vector<8xf32>
    %72 = vector.shape_cast %71 : vector<8xf32> to vector<8x1xf32>
    %cst_34 = arith.constant 3.200000e+01 : f32
    %73 = vector.broadcast %cst_34 : f32 to vector<8x1xf32>
    %74 = arith.divf %72, %73 : vector<8x1xf32>
    %75 = vector.broadcast %74 : vector<8x1xf32> to vector<8x32xf32>
    %76 = arith.subf %68, %75 : vector<8x32xf32>
    %77 = vector.broadcast %74 : vector<8x1xf32> to vector<8x32xf32>
    %78 = arith.subf %68, %77 : vector<8x32xf32>
    %79 = arith.mulf %76, %78 : vector<8x32xf32>
    %cst_35 = arith.constant dense<0.000000e+00> : vector<8xf32>
    %80 = vector.multi_reduction <add>, %79, %cst_35 [1] : vector<8x32xf32> to vector<8xf32>
    %81 = vector.shape_cast %80 : vector<8xf32> to vector<8x1xf32>
    %cst_36 = arith.constant 3.200000e+01 : f32
    %82 = vector.broadcast %cst_36 : f32 to vector<8x1xf32>
    %83 = arith.divf %81, %82 : vector<8x1xf32>
    %84 = vector.broadcast %74 : vector<8x1xf32> to vector<8x32xf32>
    %85 = arith.subf %68, %84 : vector<8x32xf32>
    %cst_37 = arith.constant 9.99999974E-6 : f32
    %86 = vector.broadcast %cst_37 : f32 to vector<8x1xf32>
    %87 = arith.addf %83, %86 : vector<8x1xf32>
    %88 = math.rsqrt %87 : vector<8x1xf32>
    %89 = vector.broadcast %88 : vector<8x1xf32> to vector<8x32xf32>
    %90 = arith.mulf %85, %89 : vector<8x32xf32>
    %91 = vector.broadcast %69 : vector<1x32xf32> to vector<8x32xf32>
    %92 = arith.mulf %90, %91 : vector<8x32xf32>
    %93 = vector.broadcast %70 : vector<1x32xf32> to vector<8x32xf32>
    %94 = arith.addf %92, %93 : vector<8x32xf32>
    %95 = arith.truncf %94 : vector<8x32xf32> to vector<8x32xbf16>
    %c0_38 = arith.constant 0 : index
    %c0_39 = arith.constant 0 : index
    %96 = vector.load %arg10[%c0_38, %c0_39] : memref<32x128xbf16, #tpu.memory_space<vmem>>, vector<32x128xbf16>
    %cst_40 = arith.constant dense<0.000000e+00> : vector<8x128xf32>
    %97 = tpu.matmul %95, %96, %cst_40 {dimension_numbers = #tpu.dot_dimension_numbers<[1], [0], [0], [1], [0, 0, 1, 1], [], []>} : vector<8x32xbf16>, vector<32x128xbf16>, vector<8x128xf32> -> vector<8x128xf32>
    %c0_41 = arith.constant 0 : index
    %c0_42 = arith.constant 0 : index
    %98 = vector.load %arg11[%c0_41, %c0_42] : memref<1x128xf32, #tpu.memory_space<vmem>>, vector<1x128xf32>
    %99 = vector.broadcast %98 : vector<1x128xf32> to vector<8x128xf32>
    %100 = arith.addf %97, %99 : vector<8x128xf32>
    %cst_43 = arith.constant 5.000000e-01 : f32
    %101 = vector.broadcast %cst_43 : f32 to vector<8x128xf32>
    %102 = arith.mulf %101, %100 : vector<8x128xf32>
    %cst_44 = arith.constant 4.471500e-02 : f32
    %103 = vector.broadcast %cst_44 : f32 to vector<8x128xf32>
    %104 = arith.mulf %103, %100 : vector<8x128xf32>
    %105 = arith.mulf %104, %100 : vector<8x128xf32>
    %106 = arith.mulf %105, %100 : vector<8x128xf32>
    %107 = arith.addf %100, %106 : vector<8x128xf32>
    %cst_45 = arith.constant 0.797884583 : f32
    %108 = vector.broadcast %cst_45 : f32 to vector<8x128xf32>
    %109 = arith.mulf %108, %107 : vector<8x128xf32>
    %110 = math.tanh %109 : vector<8x128xf32>
    %cst_46 = arith.constant 1.000000e+00 : f32
    %111 = vector.broadcast %cst_46 : f32 to vector<8x128xf32>
    %112 = arith.addf %111, %110 : vector<8x128xf32>
    %113 = arith.mulf %102, %112 : vector<8x128xf32>
    %114 = arith.truncf %113 : vector<8x128xf32> to vector<8x128xbf16>
    %c0_47 = arith.constant 0 : index
    %c0_48 = arith.constant 0 : index
    %115 = vector.load %arg12[%c0_47, %c0_48] : memref<128x32xbf16, #tpu.memory_space<vmem>>, vector<128x32xbf16>
    %cst_49 = arith.constant dense<0.000000e+00> : vector<8x32xf32>
    %116 = tpu.matmul %114, %115, %cst_49 {dimension_numbers = #tpu.dot_dimension_numbers<[1], [0], [0], [1], [0, 0, 1, 1], [], []>} : vector<8x128xbf16>, vector<128x32xbf16>, vector<8x32xf32> -> vector<8x32xf32>
    %c0_50 = arith.constant 0 : index
    %c0_51 = arith.constant 0 : index
    %117 = vector.load %arg13[%c0_50, %c0_51] : memref<1x32xf32, #tpu.memory_space<vmem>>, vector<1x32xf32>
    %118 = vector.broadcast %117 : vector<1x32xf32> to vector<8x32xf32>
    %119 = arith.addf %116, %118 : vector<8x32xf32>
    %120 = arith.addf %68, %119 : vector<8x32xf32>
    %c0_52 = arith.constant 0 : index
    %c0_53 = arith.constant 0 : index
    %c0_54 = arith.constant 0 : index
    %121 = vector.load %arg14[%c0_52, %c0_53, %c0_54] : memref<1x8x32xf32, #tpu.memory_space<vmem>>, vector<1x8x32xf32>
    %122 = vector.shape_cast %121 : vector<1x8x32xf32> to vector<8x32xf32>
    %123 = vector.shape_cast %120 : vector<8x32xf32> to vector<1x8x32xf32>
    tpu.vector_store %arg14[%c0_52, %c0_53, %c0_54], %123 {strides = array<i32>} : memref<1x8x32xf32, #tpu.memory_space<vmem>>, vector<1x8x32xf32>,
    return
  }
  func.func @transform_0(%arg0: i32) -> (i32, i32, i32) {
    %c0_i32 = arith.constant 0 : i32
    %c0_i32_0 = arith.constant 0 : i32
    %c0_i32_1 = arith.constant 0 : i32
    return %arg0, %c0_i32, %c0_i32_0 : i32, i32, i32
  }
  func.func @transform_1(%arg0: i32) -> (i32, i32) {
    %c0_i32 = arith.constant 0 : i32
    %c0_i32_0 = arith.constant 0 : i32
    %c0_i32_1 = arith.constant 0 : i32
    return %c0_i32, %c0_i32_0 : i32, i32
  }
  func.func @transform_2(%arg0: i32) -> (i32, i32) {
    %c0_i32 = arith.constant 0 : i32
    %c0_i32_0 = arith.constant 0 : i32
    %c0_i32_1 = arith.constant 0 : i32
    return %c0_i32, %c0_i32_0 : i32, i32
  }
  func.func @transform_3(%arg0: i32) -> (i32, i32, i32) {
    %c0_i32 = arith.constant 0 : i32
    %c0_i32_0 = arith.constant 0 : i32
    %c0_i32_1 = arith.constant 0 : i32
    %c0_i32_2 = arith.constant 0 : i32
    return %c0_i32, %c0_i32_0, %c0_i32_1 : i32, i32, i32
  }
  func.func @transform_4(%arg0: i32) -> (i32, i32, i32) {
    %c0_i32 = arith.constant 0 : i32
    %c0_i32_0 = arith.constant 0 : i32
    %c0_i32_1 = arith.constant 0 : i32
    %c0_i32_2 = arith.constant 0 : i32
    return %c0_i32, %c0_i32_0, %c0_i32_1 : i32, i32, i32
  }
  func.func @transform_5(%arg0: i32) -> (i32, i32, i32) {
    %c0_i32 = arith.constant 0 : i32
    %c0_i32_0 = arith.constant 0 : i32
    %c0_i32_1 = arith.constant 0 : i32
    %c0_i32_2 = arith.constant 0 : i32
    return %c0_i32, %c0_i32_0, %c0_i32_1 : i32, i32, i32
  }
  func.func @transform_6(%arg0: i32) -> (i32, i32) {
    %c0_i32 = arith.constant 0 : i32
    %c0_i32_0 = arith.constant 0 : i32
    %c0_i32_1 = arith.constant 0 : i32
    return %c0_i32, %c0_i32_0 : i32, i32
  }
  func.func @transform_7(%arg0: i32) -> (i32, i32) {
    %c0_i32 = arith.constant 0 : i32
    %c0_i32_0 = arith.constant 0 : i32
    %c0_i32_1 = arith.constant 0 : i32
    return %c0_i32, %c0_i32_0 : i32, i32
  }
  func.func @transform_8(%arg0: i32) -> (i32, i32) {
    %c0_i32 = arith.constant 0 : i32
    %c0_i32_0 = arith.constant 0 : i32
    %c0_i32_1 = arith.constant 0 : i32
    return %c0_i32, %c0_i32_0 : i32, i32
  }
  func.func @transform_9(%arg0: i32) -> (i32, i32) {
    %c0_i32 = arith.constant 0 : i32
    %c0_i32_0 = arith.constant 0 : i32
    %c0_i32_1 = arith.constant 0 : i32
    return %c0_i32, %c0_i32_0 : i32, i32
  }
  func.func @transform_10(%arg0: i32) -> (i32, i32) {
    %c0_i32 = arith.constant 0 : i32
    %c0_i32_0 = arith.constant 0 : i32
    %c0_i32_1 = arith.constant 0 : i32
    return %c0_i32, %c0_i32_0 : i32, i32
  }
  func.func @transform_11(%arg0: i32) -> (i32, i32) {
    %c0_i32 = arith.constant 0 : i32
    %c0_i32_0 = arith.constant 0 : i32
    %c0_i32_1 = arith.constant 0 : i32
    return %c0_i32, %c0_i32_0 : i32, i32
  }
  func.func @transform_12(%arg0: i32) -> (i32, i32) {
    %c0_i32 = arith.constant 0 : i32
    %c0_i32_0 = arith.constant 0 : i32
    %c0_i32_1 = arith.constant 0 : i32
    return %c0_i32, %c0_i32_0 : i32, i32
  }
  func.func @transform_13(%arg0: i32) -> (i32, i32, i32) {
    %c0_i32 = arith.constant 0 : i32
    %c0_i32_0 = arith.constant 0 : i32
    %c0_i32_1 = arith.constant 0 : i32
    return %arg0, %c0_i32, %c0_i32_0 : i32, i32, i32
  }
}

</mosaic_0001>

<llo_original>
// kernel: tpu_custom_call.1
$region0: #{tpu_custom_call.1}
  #allocation0 [shape = 'u32[]', space=smem, size = 0x4, offset = 0x4, fixed_abs, tag = 'smem constant byte address 0x4 - core index']
  #allocation1 [shape = 'u32[144,128]{1,0:T(1,128)}', space=vmem, size = 0x12000, scoped, tag = 'internal scratch']
  %s0 = inlined_call_operand.vmem [shape: f32[2,8,32], index: 0, kind: input, shape index: {}]
  %s1 = inlined_call_operand.vmem [shape: f32[1,32], index: 1, kind: input, shape index: {}]
  %s2 = inlined_call_operand.vmem [shape: f32[1,32], index: 2, kind: input, shape index: {}]
  %s3 = inlined_call_operand.vmem [shape: bf16[4,32,24], index: 3, kind: input, shape index: {}]
  %s4 = inlined_call_operand.vmem [shape: f32[4,1,24], index: 4, kind: input, shape index: {}]
  %s5 = inlined_call_operand.vmem [shape: bf16[4,8,32], index: 5, kind: input, shape index: {}]
  %s6 = inlined_call_operand.vmem [shape: f32[1,32], index: 6, kind: input, shape index: {}]
  %s7 = inlined_call_operand.vmem [shape: f32[1,32], index: 7, kind: input, shape index: {}]
  %s8 = inlined_call_operand.vmem [shape: f32[1,32], index: 8, kind: input, shape index: {}]
  %s9 = inlined_call_operand.vmem [shape: bf16[32,128], index: 9, kind: input, shape index: {}]
  %s10 = inlined_call_operand.vmem [shape: f32[1,128], index: 10, kind: input, shape index: {}]
  %s11 = inlined_call_operand.vmem [shape: bf16[128,32], index: 11, kind: input, shape index: {}]
  %s12 = inlined_call_operand.vmem [shape: f32[1,32], index: 12, kind: input, shape index: {}]
  %s13 = inlined_call_operand.hbm [shape: f32[2,8,32], index: 13, kind: output, shape index: {}]
  %s14 = sld [smem:[#allocation0]]
  $region85: #{tpu_custom_call.1} parent=0
    _
  %s16 = ssub.s32 1, %s14
  %s17 = scalar_select 0, %s16, %s14
  $region1: #{tpu_custom_call.1} parent=0
    #allocation2 [shape = 'u8[8192]{0}', space=vmem, size = 0x2000, scoped, tag = 'output window, operand 0']
    #allocation3 [shape = 's32[2]{0}', space=sflag, size = 0x8, scoped, tag = 'scoped memory for tpu_custom_call.1']
    %18 = vsyncpa [#allocation3], 0
    %s19 = scalar_lea.sflag [#allocation3], 1
    %20 = vsyncpa %s19, 0
    loop: start=0, step=1, limit=4
    $region2: #{tpu_custom_call.1} parent=1 // loop_pre_header
      _
    $region3: #{tpu_custom_call.1} parent=1 // loop_header
      %s22 = sphi 0, %s26
      %p23 = scmp.ge.s32.totalorder %s22, 4
      %s32 = sphi 0, %s34
      %s35 = sphi 0, %s32
      %s36 = sphi 0, %s35
      %s52 = sphi 0, %s36
      %s56 = sphi 0, %s56
      %s58 = sphi 0, %s56
      %s59 = sphi 0, %s58
      %s73 = sphi 0, %s59
      %s77 = sphi 0, %s77
      %s79 = sphi 0, %s77
      %s80 = sphi 0, %s79
      %s94 = sphi 0, %s80
      %s98 = sphi 0, %s98
      %s100 = sphi 0, %s98
      %s101 = sphi 0, %s100
      %s115 = sphi 0, %s101
      %s119 = sphi 0, %s119
      %s121 = sphi 0, %s119
      %s122 = sphi 0, %s121
      %s136 = sphi 0, %s122
      %s140 = sphi 0, %s140
      %s142 = sphi 0, %s140
      %s143 = sphi 0, %s142
      %s157 = sphi 0, %s143
      %s161 = sphi 0, %s161
      %s163 = sphi 0, %s161
      %s164 = sphi 0, %s163
      %s178 = sphi 0, %s164
      %s182 = sphi 0, %s182
      %s184 = sphi 0, %s182
      %s185 = sphi 0, %s184
      %s199 = sphi 0, %s185
      %s203 = sphi 0, %s203
      %s205 = sphi 0, %s203
      %s206 = sphi 0, %s205
      %s220 = sphi 0, %s206
      %s224 = sphi 0, %s224
      %s226 = sphi 0, %s224
      %s227 = sphi 0, %s226
      %s241 = sphi 0, %s227
      %s245 = sphi 0, %s245
      %s247 = sphi 0, %s245
      %s248 = sphi 0, %s247
      %s262 = sphi 0, %s248
      %s266 = sphi 0, %s266
      %s268 = sphi 0, %s266
      %s269 = sphi 0, %s268
      %s283 = sphi 0, %s269
      %s287 = sphi 0, %s287
      %s289 = sphi 0, %s287
      %s290 = sphi 0, %s289
      %s304 = sphi 0, %s290
      %s310 = sphi 0, %s312
      %s313 = sphi 0, %s310
      %s314 = sphi 0, %s313
      %s330 = sphi 0, %s314
    $region4: #{tpu_custom_call.1} parent=1 // loop_header_branch
      %25 = sbr.rel (%p23) target = $region8
    $region5: #{tpu_custom_call.1} parent=1 // loop_body
      %s27 = ssub.s32 %s22, 1
      %s28 = ssub.s32 %s22, 2
      %s29 = sadd.s32 %s22, 1
      %s30 = ssub.s32 %s22, %s29
      %p31 = scmp.eq.s32.totalorder %s30, 0
      %s33 = sadd.s32 %s32, 1
      %s34 = scalar_select %p31, %s32, %s33
      %p37 = pneg %p31
      %p38 = scmp.eq.s32.totalorder %s22, 1
      %p39 = por %p37, %p38
      %p40 = scmp.ne.s32.totalorder %s32, %s35
      %p41 = scmp.eq.s32.totalorder %s22, 0
      %p42 = por %p40, %p41
      %p43 = scmp.ne.s32.totalorder %s32, %s35
      %p44 = scmp.eq.s32.totalorder %s27, 1
      %p45 = por %p43, %p44
      %p46 = scmp.ne.s32.totalorder %s35, %s36
      %p47 = scmp.eq.s32.totalorder %s27, 0
      %p48 = por %p46, %p47
      %p49 = scmp.ne.s32.totalorder %s35, %s36
      %p50 = scmp.eq.s32.totalorder %s28, 1
      %p51 = por %p49, %p50
      %p53 = scmp.ne.s32.totalorder %s36, %s52
      %p54 = scmp.eq.s32.totalorder %s28, 0
      %p55 = por %p53, %p54
      %s57 = sadd.s32 %s56, 1
      %p60 = scmp.eq.s32.totalorder %s22, 1
      %p61 = scmp.ne.s32.totalorder %s56, %s58
      %p62 = scmp.eq.s32.totalorder %s22, 0
      %p63 = por %p61, %p62
      %p64 = scmp.ne.s32.totalorder %s56, %s58
      %p65 = scmp.eq.s32.totalorder %s27, 1
      %p66 = por %p64, %p65
      %p67 = scmp.ne.s32.totalorder %s58, %s59
      %p68 = scmp.eq.s32.totalorder %s27, 0
      %p69 = por %p67, %p68
      %p70 = scmp.ne.s32.totalorder %s58, %s59
      %p71 = scmp.eq.s32.totalorder %s28, 1
      %p72 = por %p70, %p71
      %p74 = scmp.ne.s32.totalorder %s59, %s73
      %p75 = scmp.eq.s32.totalorder %s28, 0
      %p76 = por %p74, %p75
      %s78 = sadd.s32 %s77, 1
      %p81 = scmp.eq.s32.totalorder %s22, 1
      %p82 = scmp.ne.s32.totalorder %s77, %s79
      %p83 = scmp.eq.s32.totalorder %s22, 0
      %p84 = por %p82, %p83
      %p85 = scmp.ne.s32.totalorder %s77, %s79
      %p86 = scmp.eq.s32.totalorder %s27, 1
      %p87 = por %p85, %p86
      %p88 = scmp.ne.s32.totalorder %s79, %s80
      %p89 = scmp.eq.s32.totalorder %s27, 0
      %p90 = por %p88, %p89
      %p91 = scmp.ne.s32.totalorder %s79, %s80
      %p92 = scmp.eq.s32.totalorder %s28, 1
      %p93 = por %p91, %p92
      %p95 = scmp.ne.s32.totalorder %s80, %s94
      %p96 = scmp.eq.s32.totalorder %s28, 0
      %p97 = por %p95, %p96
      %s99 = sadd.s32 %s98, 1
      %p102 = scmp.eq.s32.totalorder %s22, 1
      %p103 = scmp.ne.s32.totalorder %s98, %s100
      %p104 = scmp.eq.s32.totalorder %s22, 0
      %p105 = por %p103, %p104
      %p106 = scmp.ne.s32.totalorder %s98, %s100
      %p107 = scmp.eq.s32.totalorder %s27, 1
      %p108 = por %p106, %p107
      %p109 = scmp.ne.s32.totalorder %s100, %s101
      %p110 = scmp.eq.s32.totalorder %s27, 0
      %p111 = por %p109, %p110
      %p112 = scmp.ne.s32.totalorder %s100, %s101
      %p113 = scmp.eq.s32.totalorder %s28, 1
      %p114 = por %p112, %p113
      %p116 = scmp.ne.s32.totalorder %s101, %s115
      %p117 = scmp.eq.s32.totalorder %s28, 0
      %p118 = por %p116, %p117
      %s120 = sadd.s32 %s119, 1
      %p123 = scmp.eq.s32.totalorder %s22, 1
      %p124 = scmp.ne.s32.totalorder %s119, %s121
      %p125 = scmp.eq.s32.totalorder %s22, 0
      %p126 = por %p124, %p125
      %p127 = scmp.ne.s32.totalorder %s119, %s121
      %p128 = scmp.eq.s32.totalorder %s27, 1
      %p129 = por %p127, %p128
      %p130 = scmp.ne.s32.totalorder %s121, %s122
      %p131 = scmp.eq.s32.totalorder %s27, 0
      %p132 = por %p130, %p131
      %p133 = scmp.ne.s32.totalorder %s121, %s122
      %p134 = scmp.eq.s32.totalorder %s28, 1
      %p135 = por %p133, %p134
      %p137 = scmp.ne.s32.totalorder %s122, %s136
      %p138 = scmp.eq.s32.totalorder %s28, 0
      %p139 = por %p137, %p138
      %s141 = sadd.s32 %s140, 1
      %p144 = scmp.eq.s32.totalorder %s22, 1
      %p145 = scmp.ne.s32.totalorder %s140, %s142
      %p146 = scmp.eq.s32.totalorder %s22, 0
      %p147 = por %p145, %p146
      %p148 = scmp.ne.s32.totalorder %s140, %s142
      %p149 = scmp.eq.s32.totalorder %s27, 1
      %p150 = por %p148, %p149
      %p151 = scmp.ne.s32.totalorder %s142, %s143
      %p152 = scmp.eq.s32.totalorder %s27, 0
      %p153 = por %p151, %p152
      %p154 = scmp.ne.s32.totalorder %s142, %s143
      %p155 = scmp.eq.s32.totalorder %s28, 1
      %p156 = por %p154, %p155
      %p158 = scmp.ne.s32.totalorder %s143, %s157
      %p159 = scmp.eq.s32.totalorder %s28, 0
      %p160 = por %p158, %p159
      %s162 = sadd.s32 %s161, 1
      %p165 = scmp.eq.s32.totalorder %s22, 1
      %p166 = scmp.ne.s32.totalorder %s161, %s163
      %p167 = scmp.eq.s32.totalorder %s22, 0
      %p168 = por %p166, %p167
      %p169 = scmp.ne.s32.totalorder %s161, %s163
      %p170 = scmp.eq.s32.totalorder %s27, 1
      %p171 = por %p169, %p170
      %p172 = scmp.ne.s32.totalorder %s163, %s164
      %p173 = scmp.eq.s32.totalorder %s27, 0
      %p174 = por %p172, %p173
      %p175 = scmp.ne.s32.totalorder %s163, %s164
      %p176 = scmp.eq.s32.totalorder %s28, 1
      %p177 = por %p175, %p176
      %p179 = scmp.ne.s32.totalorder %s164, %s178
      %p180 = scmp.eq.s32.totalorder %s28, 0
      %p181 = por %p179, %p180
      %s183 = sadd.s32 %s182, 1
      %p186 = scmp.eq.s32.totalorder %s22, 1
      %p187 = scmp.ne.s32.totalorder %s182, %s184
      %p188 = scmp.eq.s32.totalorder %s22, 0
      %p189 = por %p187, %p188
      %p190 = scmp.ne.s32.totalorder %s182, %s184
      %p191 = scmp.eq.s32.totalorder %s27, 1
      %p192 = por %p190, %p191
      %p193 = scmp.ne.s32.totalorder %s184, %s185
      %p194 = scmp.eq.s32.totalorder %s27, 0
      %p195 = por %p193, %p194
      %p196 = scmp.ne.s32.totalorder %s184, %s185
      %p197 = scmp.eq.s32.totalorder %s28, 1
      %p198 = por %p196, %p197
      %p200 = scmp.ne.s32.totalorder %s185, %s199
      %p201 = scmp.eq.s32.totalorder %s28, 0
      %p202 = por %p200, %p201
      %s204 = sadd.s32 %s203, 1
      %p207 = scmp.eq.s32.totalorder %s22, 1
      %p208 = scmp.ne.s32.totalorder %s203, %s205
      %p209 = scmp.eq.s32.totalorder %s22, 0
      %p210 = por %p208, %p209
      %p211 = scmp.ne.s32.totalorder %s203, %s205
      %p212 = scmp.eq.s32.totalorder %s27, 1
      %p213 = por %p211, %p212
      %p214 = scmp.ne.s32.totalorder %s205, %s206
      %p215 = scmp.eq.s32.totalorder %s27, 0
      %p216 = por %p214, %p215
      %p217 = scmp.ne.s32.totalorder %s205, %s206
      %p218 = scmp.eq.s32.totalorder %s28, 1
      %p219 = por %p217, %p218
      %p221 = scmp.ne.s32.totalorder %s206, %s220
      %p222 = scmp.eq.s32.totalorder %s28, 0
      %p223 = por %p221, %p222
      %s225 = sadd.s32 %s224, 1
      %p228 = scmp.eq.s32.totalorder %s22, 1
      %p229 = scmp.ne.s32.totalorder %s224, %s226
      %p230 = scmp.eq.s32.totalorder %s22, 0
      %p231 = por %p229, %p230
      %p232 = scmp.ne.s32.totalorder %s224, %s226
      %p233 = scmp.eq.s32.totalorder %s27, 1
      %p234 = por %p232, %p233
      %p235 = scmp.ne.s32.totalorder %s226, %s227
      %p236 = scmp.eq.s32.totalorder %s27, 0
      %p237 = por %p235, %p236
      %p238 = scmp.ne.s32.totalorder %s226, %s227
      %p239 = scmp.eq.s32.totalorder %s28, 1
      %p240 = por %p238, %p239
      %p242 = scmp.ne.s32.totalorder %s227, %s241
      %p243 = scmp.eq.s32.totalorder %s28, 0
      %p244 = por %p242, %p243
      %s246 = sadd.s32 %s245, 1
      %p249 = scmp.eq.s32.totalorder %s22, 1
      %p250 = scmp.ne.s32.totalorder %s245, %s247
      %p251 = scmp.eq.s32.totalorder %s22, 0
      %p252 = por %p250, %p251
      %p253 = scmp.ne.s32.totalorder %s245, %s247
      %p254 = scmp.eq.s32.totalorder %s27, 1
      %p255 = por %p253, %p254
      %p256 = scmp.ne.s32.totalorder %s247, %s248
      %p257 = scmp.eq.s32.totalorder %s27, 0
      %p258 = por %p256, %p257
      %p259 = scmp.ne.s32.totalorder %s247, %s248
      %p260 = scmp.eq.s32.totalorder %s28, 1
      %p261 = por %p259, %p260
      %p263 = scmp.ne.s32.totalorder %s248, %s262
      %p264 = scmp.eq.s32.totalorder %s28, 0
      %p265 = por %p263, %p264
      %s267 = sadd.s32 %s266, 1
      %p270 = scmp.eq.s32.totalorder %s22, 1
      %p271 = scmp.ne.s32.totalorder %s266, %s268
      %p272 = scmp.eq.s32.totalorder %s22, 0
      %p273 = por %p271, %p272
      %p274 = scmp.ne.s32.totalorder %s266, %s268
      %p275 = scmp.eq.s32.totalorder %s27, 1
      %p276 = por %p274, %p275
      %p277 = scmp.ne.s32.totalorder %s268, %s269
      %p278 = scmp.eq.s32.totalorder %s27, 0
      %p279 = por %p277, %p278
      %p280 = scmp.ne.s32.totalorder %s268, %s269
      %p281 = scmp.eq.s32.totalorder %s28, 1
      %p282 = por %p280, %p281
      %p284 = scmp.ne.s32.totalorder %s269, %s283
      %p285 = scmp.eq.s32.totalorder %s28, 0
      %p286 = por %p284, %p285
      %s288 = sadd.s32 %s287, 1
      %p291 = scmp.eq.s32.totalorder %s22, 1
      %p292 = scmp.ne.s32.totalorder %s287, %s289
      %p293 = scmp.eq.s32.totalorder %s22, 0
      %p294 = por %p292, %p293
      %p295 = scmp.ne.s32.totalorder %s287, %s289
      %p296 = scmp.eq.s32.totalorder %s27, 1
      %p297 = por %p295, %p296
      %p298 = scmp.ne.s32.totalorder %s289, %s290
      %p299 = scmp.eq.s32.totalorder %s27, 0
      %p300 = por %p298, %p299
      %p301 = scmp.ne.s32.totalorder %s289, %s290
      %p302 = scmp.eq.s32.totalorder %s28, 1
      %p303 = por %p301, %p302
      %p305 = scmp.ne.s32.totalorder %s290, %s304
      %p306 = scmp.eq.s32.totalorder %s28, 0
      %p307 = por %p305, %p306
      %s308 = ssub.s32 %s22, %s29
      %p309 = scmp.eq.s32.totalorder %s308, 0
      %s311 = sadd.s32 %s310, 1
      %s312 = scalar_select %p309, %s310, %s311
      %p315 = pneg %p309
      %p316 = scmp.eq.s32.totalorder %s22, 1
      %p317 = por %p315, %p316
      %p318 = scmp.ne.s32.totalorder %s310, %s313
      %p319 = scmp.eq.s32.totalorder %s22, 0
      %p320 = por %p318, %p319
      %p321 = scmp.ne.s32.totalorder %s310, %s313
      %p322 = scmp.eq.s32.totalorder %s27, 1
      %p323 = por %p321, %p322
      %p324 = scmp.ne.s32.totalorder %s313, %s314
      %p325 = scmp.eq.s32.totalorder %s27, 0
      %p326 = por %p324, %p325
      %p327 = scmp.ne.s32.totalorder %s313, %s314
      %p328 = scmp.eq.s32.totalorder %s28, 1
      %p329 = por %p327, %p328
      %p331 = scmp.ne.s32.totalorder %s314, %s330
      %p332 = scmp.eq.s32.totalorder %s28, 0
      %p333 = por %p331, %p332
      %p334 = scmp.le.s32.totalorder 1, %s22
      %p335 = scmp.lt.s32.totalorder %s22, 3
      %p336 = pnand %p334, %p335
      %p337 = pneg %p336
      // Predicated region
      $region9: #{tpu_custom_call.1} parent=5 // pred_check
        _
      $region10: #{tpu_custom_call.1} parent=5 // pred_check_branch
        %339 = sbr.rel (%p336) target = $region12
      $region11: #{tpu_custom_call.1} parent=5 // pred_region
        %s340 = ssub.s32 %s22, 1
        // Predicated region
        $region13: #{tpu_custom_call.1} parent=11 // pred_check
          %p341 = pneg %p69
        $region14: #{tpu_custom_call.1} parent=11 // pred_check_branch
          %343 = sbr.rel (%p341) target = $region16
        $region15: #{tpu_custom_call.1} parent=11 // pred_region
          _
        $region16: #{tpu_custom_call.1} parent=11 // pred_fallthru
          _
        // Predicated region
        $region17: #{tpu_custom_call.1} parent=11 // pred_check
          %p344 = pneg %p90
        $region18: #{tpu_custom_call.1} parent=11 // pred_check_branch
          %346 = sbr.rel (%p344) target = $region20
        $region19: #{tpu_custom_call.1} parent=11 // pred_region
          _
        $region20: #{tpu_custom_call.1} parent=11 // pred_fallthru
          _
        // Predicated region
        $region21: #{tpu_custom_call.1} parent=11 // pred_check
          %p347 = pneg %p111
        $region22: #{tpu_custom_call.1} parent=11 // pred_check_branch
          %349 = sbr.rel (%p347) target = $region24
        $region23: #{tpu_custom_call.1} parent=11 // pred_region
          _
        $region24: #{tpu_custom_call.1} parent=11 // pred_fallthru
          _
        // Predicated region
        $region25: #{tpu_custom_call.1} parent=11 // pred_check
          %p350 = pneg %p132
        $region26: #{tpu_custom_call.1} parent=11 // pred_check_branch
          %352 = sbr.rel (%p350) target = $region28
        $region27: #{tpu_custom_call.1} parent=11 // pred_region
          _
        $region28: #{tpu_custom_call.1} parent=11 // pred_fallthru
          _
        // Predicated region
        $region29: #{tpu_custom_call.1} parent=11 // pred_check
          %p353 = pneg %p153
        $region30: #{tpu_custom_call.1} parent=11 // pred_check_branch
          %355 = sbr.rel (%p353) target = $region32
        $region31: #{tpu_custom_call.1} parent=11 // pred_region
          _
        $region32: #{tpu_custom_call.1} parent=11 // pred_fallthru
          _
        // Predicated region
        $region33: #{tpu_custom_call.1} parent=11 // pred_check
          %p356 = pneg %p174
        $region34: #{tpu_custom_call.1} parent=11 // pred_check_branch
          %358 = sbr.rel (%p356) target = $region36
        $region35: #{tpu_custom_call.1} parent=11 // pred_region
          _
        $region36: #{tpu_custom_call.1} parent=11 // pred_fallthru
          _
        // Predicated region
        $region37: #{tpu_custom_call.1} parent=11 // pred_check
          %p359 = pneg %p195
        $region38: #{tpu_custom_call.1} parent=11 // pred_check_branch
          %361 = sbr.rel (%p359) target = $region40
        $region39: #{tpu_custom_call.1} parent=11 // pred_region
          _
        $region40: #{tpu_custom_call.1} parent=11 // pred_fallthru
          _
        // Predicated region
        $region41: #{tpu_custom_call.1} parent=11 // pred_check
          %p362 = pneg %p216
        $region42: #{tpu_custom_call.1} parent=11 // pred_check_branch
          %364 = sbr.rel (%p362) target = $region44
        $region43: #{tpu_custom_call.1} parent=11 // pred_region
          _
        $region44: #{tpu_custom_call.1} parent=11 // pred_fallthru
          _
        // Predicated region
        $region45: #{tpu_custom_call.1} parent=11 // pred_check
          %p365 = pneg %p237
        $region46: #{tpu_custom_call.1} parent=11 // pred_check_branch
          %367 = sbr.rel (%p365) target = $region48
        $region47: #{tpu_custom_call.1} parent=11 // pred_region
          _
        $region48: #{tpu_custom_call.1} parent=11 // pred_fallthru
          _
        // Predicated region
        $region49: #{tpu_custom_call.1} parent=11 // pred_check
          %p368 = pneg %p258
        $region50: #{tpu_custom_call.1} parent=11 // pred_check_branch
          %370 = sbr.rel (%p368) target = $region52
        $region51: #{tpu_custom_call.1} parent=11 // pred_region
          _
        $region52: #{tpu_custom_call.1} parent=11 // pred_fallthru
          _
        // Predicated region
        $region53: #{tpu_custom_call.1} parent=11 // pred_check
          %p371 = pneg %p279
        $region54: #{tpu_custom_call.1} parent=11 // pred_check_branch
          %373 = sbr.rel (%p371) target = $region56
        $region55: #{tpu_custom_call.1} parent=11 // pred_region
          _
        $region56: #{tpu_custom_call.1} parent=11 // pred_fallthru
          _
        // Predicated region
        $region57: #{tpu_custom_call.1} parent=11 // pred_check
          %p374 = pneg %p300
        $region58: #{tpu_custom_call.1} parent=11 // pred_check_branch
          %376 = sbr.rel (%p374) target = $region60
        $region59: #{tpu_custom_call.1} parent=11 // pred_region
          _
        $region60: #{tpu_custom_call.1} parent=11 // pred_fallthru
          _
      $region12: #{tpu_custom_call.1} parent=5 // pred_fallthru
        _
      %p377 = scmp.lt.s32.totalorder %s22, 2
      // Predicated region
      $region61: #{tpu_custom_call.1} parent=5 // pred_check
        %p378 = pneg %p377
      $region62: #{tpu_custom_call.1} parent=5 // pred_check_branch
        %380 = sbr.rel (%p378) target = $region64
      $region63: #{tpu_custom_call.1} parent=5 // pred_region
        // Predicated region
        $region65: #{tpu_custom_call.1} parent=63 // pred_check
          %p381 = pneg %p42
        $region66: #{tpu_custom_call.1} parent=63 // pred_check_branch
          %383 = sbr.rel (%p381) target = $region68
        $region67: #{tpu_custom_call.1} parent=63 // pred_region
          %p384 = scmp.lt.s32.totalorder %s22, 1
          %s385 = scalar_select %p384, %s22, 1
          %s386 = smul.addr %s385, 8
          %s387 = scalar_lea.vmem %s0, %s386
        $region68: #{tpu_custom_call.1} parent=63 // pred_fallthru
          _
      $region64: #{tpu_custom_call.1} parent=5 // pred_fallthru
        _
      %p388 = scmp.le.s32.totalorder 1, %s22
      %p389 = scmp.lt.s32.totalorder %s22, 3
      %p390 = pnand %p388, %p389
      %p391 = pneg %p390
      // Predicated region
      $region69: #{tpu_custom_call.1} parent=5 // pred_check
        _
      $region70: #{tpu_custom_call.1} parent=5 // pred_check_branch
        %393 = sbr.rel (%p390) target = $region72
      $region71: #{tpu_custom_call.1} parent=5 // pred_region
        %s394 = ssub.s32 %s22, 1
        %p395 = scmp.lt.s32.totalorder %s27, 1
        %s396 = scalar_select %p395, %s27, 1
        %s397 = smul.addr %s396, 8
        %s398 = scalar_lea.vmem %s0, %s397
        %p399 = pneg %p48
        %p400 = pneg %p45
        %p401 = pneg %p69
        %p402 = pneg %p66
        %p403 = pneg %p90
        %p404 = pneg %p87
        %p405 = pneg %p111
        %p406 = pneg %p108
        %p407 = pneg %p132
        %p408 = pneg %p129
        %p409 = pneg %p153
        %p410 = pneg %p150
        %p411 = pneg %p174
        %p412 = pneg %p171
        %p413 = pneg %p195
        %p414 = pneg %p192
        %p415 = pneg %p216
        %p416 = pneg %p213
        %p417 = pneg %p237
        %p418 = pneg %p234
        %p419 = pneg %p258
        %p420 = pneg %p255
        %p421 = pneg %p279
        %p422 = pneg %p276
        %p423 = pneg %p300
        %p424 = pneg %p297
        %p425 = pneg %p326
        %p426 = pneg %p323
        %s427 = sand.u32 %s313, 1
        %s428 = scalar_lea.sflag [#allocation3], %s427
        %s429 = sand.u32 %s313, 1
        %s430 = smul.addr %s429, 8
        %s431 = scalar_lea.vmem [#allocation2], %s430
        %p432 = scmp.lt.s32.totalorder %s27, 1
        %s433 = scalar_select %p432, %s27, 1
        %s434 = smul.addr %s433, 8
        %s435 = scalar_lea.vmem %s0, %s434
        %v437 = vld [vmem:[%s435] sm:$0xff]
        %v438 = vld [vmem:[%s1] sm:$0x1]
        %v439 = vld [vmem:[%s2] sm:$0x1]
        %vm440 = vcmask 261120
        %v441 = vsel %vm440, %v437, 0.0
        %442 = vadd.xlane.f32.xlu0 %v441
        %v443 = vpop.xlane.xlu0 %442
        %v444 = vrcp.pop 32.0
        %v445 = vmul.f32 %v443, %v444
        %v446 = vsub.f32 %v437, %v445
        %v447 = vmul.f32 %v446, %v446
        %v448 = vsel %vm440, %v447, 0.0
        %449 = vadd.xlane.f32.xlu0 %v448
        %v450 = vpop.xlane.xlu0 %449
        %v451 = vmul.f32 %v450, %v444
        %v452 = vadd.f32 %v451, 1e-05
        %v453 = vrsqrt.pop %v452
        %v454 = vmul.f32 %v446, %v453
        %v456 = vlaneseq
        %v457 = vshrl.u32 %v456, 7
        %v458 = vsub.s32 0, %v457
        %v459 = vrot.slane %v438, %v458
        %v461 = vmul.f32 %v454, %v459
        %v463 = vlaneseq
        %v464 = vshrl.u32 %v463, 7
        %v465 = vsub.s32 0, %v464
        %v466 = vrot.slane %v439, %v465
        %v468 = vadd.f32 %v461, %v466
        %v469 = vpack.c.bf16 %v468, %v468
        %v470 = vld [vmem:[%s3] sm:$0xf]
        %v471 = vld [vmem:[%s3 + $0x4] sm:$0xf]
        %v472 = vld [vmem:[%s3 + $0x8] sm:$0xf]
        %v473 = vld [vmem:[%s3 + $0xc] sm:$0xf]
        %v474 = vld [vmem:[%s3 + $0x10] sm:$0xf]
        %v475 = vld [vmem:[%s3 + $0x14] sm:$0xf]
        %v476 = vld [vmem:[%s3 + $0x18] sm:$0xf]
        %v477 = vld [vmem:[%s3 + $0x1c] sm:$0xf]
        %v478 = vld [vmem:[%s3 + $0x20] sm:$0xf]
        %v479 = vld [vmem:[%s3 + $0x24] sm:$0xf]
        %v480 = vld [vmem:[%s3 + $0x28] sm:$0xf]
        %v481 = vld [vmem:[%s3 + $0x2c] sm:$0xf]
        %v482 = vld [vmem:[%s3 + $0x30] sm:$0xf]
        %v483 = vld [vmem:[%s3 + $0x34] sm:$0xf]
        %v484 = vld [vmem:[%s3 + $0x38] sm:$0xf]
        %v485 = vld [vmem:[%s3 + $0x3c] sm:$0xf]
        %v486 = vld [vmem:[%s4] sm:$0x1]
        %v487 = vld [vmem:[%s4 + $0x1] sm:$0x1]
        %v488 = vld [vmem:[%s4 + $0x2] sm:$0x1]
        %v489 = vld [vmem:[%s4 + $0x3] sm:$0x1]
        %v494 = vlaneseq
        %v495 = vshrl.u32 %v494, 7
        %v496 = vsub.s32 0, %v495
        %v497 = vrot.slane %v486, %v496
        %v498 = vlaneseq
        %v499 = vshrl.u32 %v498, 7
        %v500 = vsub.s32 0, %v499
        %v501 = vrot.slane %v487, %v500
        %v502 = vlaneseq
        %v503 = vshrl.u32 %v502, 7
        %v504 = vsub.s32 0, %v503
        %v505 = vrot.slane %v488, %v504
        %v506 = vlaneseq
        %v507 = vshrl.u32 %v506, 7
        %v508 = vsub.s32 0, %v507
        %v509 = vrot.slane %v489, %v508
        %v518 = vunpack.c.l.b16 %v470
        %v519 = vunpack.c.l.b16 %v471
        %v520 = vunpack.c.l.b16 %v472
        %v521 = vunpack.c.l.b16 %v473
        %v522 = vpack.c.b16 %v519, %v518
        %v523 = vpack.c.b16 %v521, %v520
        %v527 = vsel %vm440, %v469, 0
        %529 = vmatprep.subr.bf16.mxu0 0
        %530 = vmatpush1.bf16.msra.mxu0 %v522
        %531 = vmatprep.subr.bf16.mxu0 0
        %532 = vmatpush1.bf16.msra.mxu0 %v523
        %533 = vmatprep.subr.bf16.mxu0 0
        %534 = vmatpush1.bf16.msra.mxu0 0
        %535 = vmatprep.subr.bf16.mxu0 0
        %536 = vmatpush1.bf16.msra.mxu0 0
        %537 = vmatprep.subr.bf16.mxu0 0
        %538 = vmatpush1.bf16.msra.mxu0 0
        %539 = vmatprep.subr.bf16.mxu0 0
        %540 = vmatpush1.bf16.msra.mxu0 0
        %541 = vmatprep.subr.bf16.mxu0 0
        %542 = vmatpush1.bf16.msra.mxu0 0
        %543 = vmatprep.subr.bf16.mxu0 0
        %544 = vmatpush1.bf16.msra.mxu0 0
        %545 = vmatprep.subr.bf16.mxu0 0
        %546 = vmatpush1.bf16.msra.mxu0 0
        %547 = vmatprep.subr.bf16.mxu0 0
        %548 = vmatpush1.bf16.msra.mxu0 0
        %549 = vmatprep.subr.bf16.mxu0 0
        %550 = vmatpush1.bf16.msra.mxu0 0
        %551 = vmatprep.subr.bf16.mxu0 0
        %552 = vmatpush1.bf16.msra.mxu0 0
        %553 = vmatprep.subr.bf16.mxu0 0
        %554 = vmatpush1.bf16.msra.mxu0 0
        %555 = vmatprep.subr.bf16.mxu0 0
        %556 = vmatpush1.bf16.msra.mxu0 0
        %557 = vmatprep.subr.bf16.mxu0 0
        %558 = vmatpush1.bf16.msra.mxu0 0
        %559 = vmatprep.subr.bf16.mxu0 0
        %560 = vmatpush1.bf16.msra.mxu0 0
        %561 = vmatprep.mubr.bf16.mxu0 0
        %562 = vmatmul.mubr.bf16.gmra.mrb[0].mxu0 %v527
        %v563 = vpop.f32.mrb[0].mxu0
        %v564 = vadd.f32 %v497, %v563
        %v565 = vpop.f32.mrb[0].mxu0
        %v566 = vpop.f32.mrb[0].mxu0
        %v567 = vpop.f32.mrb[0].mxu0
        %568 = vdwg.mxu0
        %v573 = vunpack.c.l.b16 %v474
        %v574 = vunpack.c.l.b16 %v475
        %v575 = vunpack.c.l.b16 %v476
        %v576 = vunpack.c.l.b16 %v477
        %v577 = vpack.c.b16 %v574, %v573
        %v578 = vpack.c.b16 %v576, %v575
        %581 = vmatprep.subr.bf16.mxu0 0
        %582 = vmatpush1.bf16.msra.mxu0 %v577
        %583 = vmatprep.subr.bf16.mxu0 0
        %584 = vmatpush1.bf16.msra.mxu0 %v578
        %585 = vmatprep.subr.bf16.mxu0 0
        %586 = vmatpush1.bf16.msra.mxu0 0
        %587 = vmatprep.subr.bf16.mxu0 0
        %588 = vmatpush1.bf16.msra.mxu0 0
        %589 = vmatprep.subr.bf16.mxu0 0
        %590 = vmatpush1.bf16.msra.mxu0 0
        %591 = vmatprep.subr.bf16.mxu0 0
        %592 = vmatpush1.bf16.msra.mxu0 0
        %593 = vmatprep.subr.bf16.mxu0 0
        %594 = vmatpush1.bf16.msra.mxu0 0
        %595 = vmatprep.subr.bf16.mxu0 0
        %596 = vmatpush1.bf16.msra.mxu0 0
        %597 = vmatprep.subr.bf16.mxu0 0
        %598 = vmatpush1.bf16.msra.mxu0 0
        %599 = vmatprep.subr.bf16.mxu0 0
        %600 = vmatpush1.bf16.msra.mxu0 0
        %601 = vmatprep.subr.bf16.mxu0 0
        %602 = vmatpush1.bf16.msra.mxu0 0
        %603 = vmatprep.subr.bf16.mxu0 0
        %604 = vmatpush1.bf16.msra.mxu0 0
        %605 = vmatprep.subr.bf16.mxu0 0
        %606 = vmatpush1.bf16.msra.mxu0 0
        %607 = vmatprep.subr.bf16.mxu0 0
        %608 = vmatpush1.bf16.msra.mxu0 0
        %609 = vmatprep.subr.bf16.mxu0 0
        %610 = vmatpush1.bf16.msra.mxu0 0
        %611 = vmatprep.subr.bf16.mxu0 0
        %612 = vmatpush1.bf16.msra.mxu0 0
        %613 = vmatprep.mubr.bf16.mxu0 0
        %614 = vmatmul.mubr.bf16.gmra.mrb[0].mxu0 %v527
        %v615 = vpop.f32.mrb[0].mxu0
        %v616 = vadd.f32 %v501, %v615
        %v617 = vpop.f32.mrb[0].mxu0
        %v618 = vpop.f32.mrb[0].mxu0
        %v619 = vpop.f32.mrb[0].mxu0
        %620 = vdwg.mxu0
        %v625 = vunpack.c.l.b16 %v478
        %v626 = vunpack.c.l.b16 %v479
        %v627 = vunpack.c.l.b16 %v480
        %v628 = vunpack.c.l.b16 %v481
        %v629 = vpack.c.b16 %v626, %v625
        %v630 = vpack.c.b16 %v628, %v627
        %633 = vmatprep.subr.bf16.mxu0 0
        %634 = vmatpush1.bf16.msra.mxu0 %v629
        %635 = vmatprep.subr.bf16.mxu0 0
        %636 = vmatpush1.bf16.msra.mxu0 %v630
        %637 = vmatprep.subr.bf16.mxu0 0
        %638 = vmatpush1.bf16.msra.mxu0 0
        %639 = vmatprep.subr.bf16.mxu0 0
        %640 = vmatpush1.bf16.msra.mxu0 0
        %641 = vmatprep.subr.bf16.mxu0 0
        %642 = vmatpush1.bf16.msra.mxu0 0
        %643 = vmatprep.subr.bf16.mxu0 0
        %644 = vmatpush1.bf16.msra.mxu0 0
        %645 = vmatprep.subr.bf16.mxu0 0
        %646 = vmatpush1.bf16.msra.mxu0 0
        %647 = vmatprep.subr.bf16.mxu0 0
        %648 = vmatpush1.bf16.msra.mxu0 0
        %649 = vmatprep.subr.bf16.mxu0 0
        %650 = vmatpush1.bf16.msra.mxu0 0
        %651 = vmatprep.subr.bf16.mxu0 0
        %652 = vmatpush1.bf16.msra.mxu0 0
        %653 = vmatprep.subr.bf16.mxu0 0
        %654 = vmatpush1.bf16.msra.mxu0 0
        %655 = vmatprep.subr.bf16.mxu0 0
        %656 = vmatpush1.bf16.msra.mxu0 0
        %657 = vmatprep.subr.bf16.mxu0 0
        %658 = vmatpush1.bf16.msra.mxu0 0
        %659 = vmatprep.subr.bf16.mxu0 0
        %660 = vmatpush1.bf16.msra.mxu0 0
        %661 = vmatprep.subr.bf16.mxu0 0
        %662 = vmatpush1.bf16.msra.mxu0 0
        %663 = vmatprep.subr.bf16.mxu0 0
        %664 = vmatpush1.bf16.msra.mxu0 0
        %665 = vmatprep.mubr.bf16.mxu0 0
        %666 = vmatmul.mubr.bf16.gmra.mrb[0].mxu0 %v527
        %v667 = vpop.f32.mrb[0].mxu0
        %v668 = vadd.f32 %v505, %v667
        %v669 = vpop.f32.mrb[0].mxu0
        %v670 = vpop.f32.mrb[0].mxu0
        %v671 = vpop.f32.mrb[0].mxu0
        %672 = vdwg.mxu0
        %v677 = vunpack.c.l.b16 %v482
        %v678 = vunpack.c.l.b16 %v483
        %v679 = vunpack.c.l.b16 %v484
        %v680 = vunpack.c.l.b16 %v485
        %v681 = vpack.c.b16 %v678, %v677
        %v682 = vpack.c.b16 %v680, %v679
        %685 = vmatprep.subr.bf16.mxu0 0
        %686 = vmatpush1.bf16.msra.mxu0 %v681
        %687 = vmatprep.subr.bf16.mxu0 0
        %688 = vmatpush1.bf16.msra.mxu0 %v682
        %689 = vmatprep.subr.bf16.mxu0 0
        %690 = vmatpush1.bf16.msra.mxu0 0
        %691 = vmatprep.subr.bf16.mxu0 0
        %692 = vmatpush1.bf16.msra.mxu0 0
        %693 = vmatprep.subr.bf16.mxu0 0
        %694 = vmatpush1.bf16.msra.mxu0 0
        %695 = vmatprep.subr.bf16.mxu0 0
        %696 = vmatpush1.bf16.msra.mxu0 0
        %697 = vmatprep.subr.bf16.mxu0 0
        %698 = vmatpush1.bf16.msra.mxu0 0
        %699 = vmatprep.subr.bf16.mxu0 0
        %700 = vmatpush1.bf16.msra.mxu0 0
        %701 = vmatprep.subr.bf16.mxu0 0
        %702 = vmatpush1.bf16.msra.mxu0 0
        %703 = vmatprep.subr.bf16.mxu0 0
        %704 = vmatpush1.bf16.msra.mxu0 0
        %705 = vmatprep.subr.bf16.mxu0 0
        %706 = vmatpush1.bf16.msra.mxu0 0
        %707 = vmatprep.subr.bf16.mxu0 0
        %708 = vmatpush1.bf16.msra.mxu0 0
        %709 = vmatprep.subr.bf16.mxu0 0
        %710 = vmatpush1.bf16.msra.mxu0 0
        %711 = vmatprep.subr.bf16.mxu0 0
        %712 = vmatpush1.bf16.msra.mxu0 0
        %713 = vmatprep.subr.bf16.mxu0 0
        %714 = vmatpush1.bf16.msra.mxu0 0
        %715 = vmatprep.subr.bf16.mxu0 0
        %716 = vmatpush1.bf16.msra.mxu0 0
        %717 = vmatprep.mubr.bf16.mxu0 0
        %718 = vmatmul.mubr.bf16.gmra.mrb[0].mxu0 %v527
        %v719 = vpop.f32.mrb[0].mxu0
        %v720 = vadd.f32 %v509, %v719
        %v721 = vpop.f32.mrb[0].mxu0
        %v722 = vpop.f32.mrb[0].mxu0
        %v723 = vpop.f32.mrb[0].mxu0
        %724 = vdwg.mxu0
        %v725 = vpack.c.bf16 %v564, %v564
        %v726 = vpack.c.bf16 %v616, %v616
        %v727 = vpack.c.bf16 %v668, %v668
        %v728 = vpack.c.bf16 %v720, %v720
        %730 = vrot.lane.b32.xlu0 %v725, 120
        %v731 = vpop.permute.xlu0 %730
        %vm732 = vcmask 64512
        %v734 = vsel %vm732, %v725, 0
        %v737 = vsel %vm732, %v731, 0
        %739 = vmatprep.subr.bf16.mxu0 0
        %740 = vmatpush1.bf16.xpose.msra.mxu0 %v737
        %741 = vmatprep.subr.bf16.mxu0 0
        %742 = vmatpush1.bf16.xpose.msra.mxu0 0
        %743 = vmatprep.subr.bf16.mxu0 0
        %744 = vmatpush1.bf16.xpose.msra.mxu0 0
        %745 = vmatprep.subr.bf16.mxu0 0
        %746 = vmatpush1.bf16.xpose.msra.mxu0 0
        %747 = vmatprep.subr.bf16.mxu0 0
        %748 = vmatpush1.bf16.xpose.msra.mxu0 0
        %749 = vmatprep.subr.bf16.mxu0 0
        %750 = vmatpush1.bf16.xpose.msra.mxu0 0
        %751 = vmatprep.subr.bf16.mxu0 0
        %752 = vmatpush1.bf16.xpose.msra.mxu0 0
        %753 = vmatprep.subr.bf16.mxu0 0
        %754 = vmatpush1.bf16.xpose.msra.mxu0 0
        %755 = vmatprep.subr.bf16.mxu0 0
        %756 = vmatpush1.bf16.xpose.msra.mxu0 0
        %757 = vmatprep.subr.bf16.mxu0 0
        %758 = vmatpush1.bf16.xpose.msra.mxu0 0
        %759 = vmatprep.subr.bf16.mxu0 0
        %760 = vmatpush1.bf16.xpose.msra.mxu0 0
        %761 = vmatprep.subr.bf16.mxu0 0
        %762 = vmatpush1.bf16.xpose.msra.mxu0 0
        %763 = vmatprep.subr.bf16.mxu0 0
        %764 = vmatpush1.bf16.xpose.msra.mxu0 0
        %765 = vmatprep.subr.bf16.mxu0 0
        %766 = vmatpush1.bf16.xpose.msra.mxu0 0
        %767 = vmatprep.subr.bf16.mxu0 0
        %768 = vmatpush1.bf16.xpose.msra.mxu0 0
        %769 = vmatprep.subr.bf16.mxu0 0
        %770 = vmatpush1.bf16.xpose.msra.mxu0 0
        %771 = vmatprep.mubr.bf16.mxu0 0
        %772 = vmatmul.mubr.bf16.gmra.mrb[0].mxu0 %v734
        %v773 = vpop.f32.mrb[0].mxu0
        %v774 = vadd.f32 0.0, %v773
        %v775 = vpop.f32.mrb[0].mxu0
        %v776 = vpop.f32.mrb[0].mxu0
        %v777 = vpop.f32.mrb[0].mxu0
        %778 = vdwg.mxu0
        %780 = vrot.lane.b32.xlu0 %v726, 120
        %v781 = vpop.permute.xlu0 %780
        %v783 = vsel %vm732, %v726, 0
        %v786 = vsel %vm732, %v781, 0
        %788 = vmatprep.subr.bf16.mxu0 0
        %789 = vmatpush1.bf16.xpose.msra.mxu0 %v786
        %790 = vmatprep.subr.bf16.mxu0 0
        %791 = vmatpush1.bf16.xpose.msra.mxu0 0
        %792 = vmatprep.subr.bf16.mxu0 0
        %793 = vmatpush1.bf16.xpose.msra.mxu0 0
        %794 = vmatprep.subr.bf16.mxu0 0
        %795 = vmatpush1.bf16.xpose.msra.mxu0 0
        %796 = vmatprep.subr.bf16.mxu0 0
        %797 = vmatpush1.bf16.xpose.msra.mxu0 0
        %798 = vmatprep.subr.bf16.mxu0 0
        %799 = vmatpush1.bf16.xpose.msra.mxu0 0
        %800 = vmatprep.subr.bf16.mxu0 0
        %801 = vmatpush1.bf16.xpose.msra.mxu0 0
        %802 = vmatprep.subr.bf16.mxu0 0
        %803 = vmatpush1.bf16.xpose.msra.mxu0 0
        %804 = vmatprep.subr.bf16.mxu0 0
        %805 = vmatpush1.bf16.xpose.msra.mxu0 0
        %806 = vmatprep.subr.bf16.mxu0 0
        %807 = vmatpush1.bf16.xpose.msra.mxu0 0
        %808 = vmatprep.subr.bf16.mxu0 0
        %809 = vmatpush1.bf16.xpose.msra.mxu0 0
        %810 = vmatprep.subr.bf16.mxu0 0
        %811 = vmatpush1.bf16.xpose.msra.mxu0 0
        %812 = vmatprep.subr.bf16.mxu0 0
        %813 = vmatpush1.bf16.xpose.msra.mxu0 0
        %814 = vmatprep.subr.bf16.mxu0 0
        %815 = vmatpush1.bf16.xpose.msra.mxu0 0
        %816 = vmatprep.subr.bf16.mxu0 0
        %817 = vmatpush1.bf16.xpose.msra.mxu0 0
        %818 = vmatprep.subr.bf16.mxu0 0
        %819 = vmatpush1.bf16.xpose.msra.mxu0 0
        %820 = vmatprep.mubr.bf16.mxu0 0
        %821 = vmatmul.mubr.bf16.gmra.mrb[0].mxu0 %v783
        %v822 = vpop.f32.mrb[0].mxu0
        %v823 = vadd.f32 0.0, %v822
        %v824 = vpop.f32.mrb[0].mxu0
        %v825 = vpop.f32.mrb[0].mxu0
        %v826 = vpop.f32.mrb[0].mxu0
        %827 = vdwg.mxu0
        %829 = vrot.lane.b32.xlu0 %v727, 120
        %v830 = vpop.permute.xlu0 %829
        %v832 = vsel %vm732, %v727, 0
        %v835 = vsel %vm732, %v830, 0
        %837 = vmatprep.subr.bf16.mxu0 0
        %838 = vmatpush1.bf16.xpose.msra.mxu0 %v835
        %839 = vmatprep.subr.bf16.mxu0 0
        %840 = vmatpush1.bf16.xpose.msra.mxu0 0
        %841 = vmatprep.subr.bf16.mxu0 0
        %842 = vmatpush1.bf16.xpose.msra.mxu0 0
        %843 = vmatprep.subr.bf16.mxu0 0
        %844 = vmatpush1.bf16.xpose.msra.mxu0 0
        %845 = vmatprep.subr.bf16.mxu0 0
        %846 = vmatpush1.bf16.xpose.msra.mxu0 0
        %847 = vmatprep.subr.bf16.mxu0 0
        %848 = vmatpush1.bf16.xpose.msra.mxu0 0
        %849 = vmatprep.subr.bf16.mxu0 0
        %850 = vmatpush1.bf16.xpose.msra.mxu0 0
        %851 = vmatprep.subr.bf16.mxu0 0
        %852 = vmatpush1.bf16.xpose.msra.mxu0 0
        %853 = vmatprep.subr.bf16.mxu0 0
        %854 = vmatpush1.bf16.xpose.msra.mxu0 0
        %855 = vmatprep.subr.bf16.mxu0 0
        %856 = vmatpush1.bf16.xpose.msra.mxu0 0
        %857 = vmatprep.subr.bf16.mxu0 0
        %858 = vmatpush1.bf16.xpose.msra.mxu0 0
        %859 = vmatprep.subr.bf16.mxu0 0
        %860 = vmatpush1.bf16.xpose.msra.mxu0 0
        %861 = vmatprep.subr.bf16.mxu0 0
        %862 = vmatpush1.bf16.xpose.msra.mxu0 0
        %863 = vmatprep.subr.bf16.mxu0 0
        %864 = vmatpush1.bf16.xpose.msra.mxu0 0
        %865 = vmatprep.subr.bf16.mxu0 0
        %866 = vmatpush1.bf16.xpose.msra.mxu0 0
        %867 = vmatprep.subr.bf16.mxu0 0
        %868 = vmatpush1.bf16.xpose.msra.mxu0 0
        %869 = vmatprep.mubr.bf16.mxu0 0
        %870 = vmatmul.mubr.bf16.gmra.mrb[0].mxu0 %v832
        %v871 = vpop.f32.mrb[0].mxu0
        %v872 = vadd.f32 0.0, %v871
        %v873 = vpop.f32.mrb[0].mxu0
        %v874 = vpop.f32.mrb[0].mxu0
        %v875 = vpop.f32.mrb[0].mxu0
        %876 = vdwg.mxu0
        %878 = vrot.lane.b32.xlu0 %v728, 120
        %v879 = vpop.permute.xlu0 %878
        %v881 = vsel %vm732, %v728, 0
        %v884 = vsel %vm732, %v879, 0
        %886 = vmatprep.subr.bf16.mxu0 0
        %887 = vmatpush1.bf16.xpose.msra.mxu0 %v884
        %888 = vmatprep.subr.bf16.mxu0 0
        %889 = vmatpush1.bf16.xpose.msra.mxu0 0
        %890 = vmatprep.subr.bf16.mxu0 0
        %891 = vmatpush1.bf16.xpose.msra.mxu0 0
        %892 = vmatprep.subr.bf16.mxu0 0
        %893 = vmatpush1.bf16.xpose.msra.mxu0 0
        %894 = vmatprep.subr.bf16.mxu0 0
        %895 = vmatpush1.bf16.xpose.msra.mxu0 0
        %896 = vmatprep.subr.bf16.mxu0 0
        %897 = vmatpush1.bf16.xpose.msra.mxu0 0
        %898 = vmatprep.subr.bf16.mxu0 0
        %899 = vmatpush1.bf16.xpose.msra.mxu0 0
        %900 = vmatprep.subr.bf16.mxu0 0
        %901 = vmatpush1.bf16.xpose.msra.mxu0 0
        %902 = vmatprep.subr.bf16.mxu0 0
        %903 = vmatpush1.bf16.xpose.msra.mxu0 0
        %904 = vmatprep.subr.bf16.mxu0 0
        %905 = vmatpush1.bf16.xpose.msra.mxu0 0
        %906 = vmatprep.subr.bf16.mxu0 0
        %907 = vmatpush1.bf16.xpose.msra.mxu0 0
        %908 = vmatprep.subr.bf16.mxu0 0
        %909 = vmatpush1.bf16.xpose.msra.mxu0 0
        %910 = vmatprep.subr.bf16.mxu0 0
        %911 = vmatpush1.bf16.xpose.msra.mxu0 0
        %912 = vmatprep.subr.bf16.mxu0 0
        %913 = vmatpush1.bf16.xpose.msra.mxu0 0
        %914 = vmatprep.subr.bf16.mxu0 0
        %915 = vmatpush1.bf16.xpose.msra.mxu0 0
        %916 = vmatprep.subr.bf16.mxu0 0
        %917 = vmatpush1.bf16.xpose.msra.mxu0 0
        %918 = vmatprep.mubr.bf16.mxu0 0
        %919 = vmatmul.mubr.bf16.gmra.mrb[0].mxu0 %v881
        %v920 = vpop.f32.mrb[0].mxu0
        %v921 = vadd.f32 0.0, %v920
        %v922 = vpop.f32.mrb[0].mxu0
        %v923 = vpop.f32.mrb[0].mxu0
        %v924 = vpop.f32.mrb[0].mxu0
        %925 = vdwg.mxu0
        %v926 = vlaneseq
        %v927 = vshrl.u32 %v926, 7
        %v928 = vlaneseq
        %v929 = vand.u32 %v928, 127
        %vm930 = vcmp.le.s32.totalorder %v929, %v927
        %v931 = vsel %vm930, %v774, -1e+30
        %v932 = vsel %vm930, %v823, -1e+30
        %v933 = vsel %vm930, %v872, -1e+30
        %v934 = vsel %vm930, %v921, -1e+30
        %v935 = vsel %vm732, %v931, -inf
        %936 = vmax.xlane.f32.xlu0 %v935
        %v937 = vpop.xlane.xlu0 %936
        %v938 = vsel %vm732, %v932, -inf
        %939 = vmax.xlane.f32.xlu0 %v938
        %v940 = vpop.xlane.xlu0 %939
        %v941 = vsel %vm732, %v933, -inf
        %942 = vmax.xlane.f32.xlu0 %v941
        %v943 = vpop.xlane.xlu0 %942
        %v944 = vsel %vm732, %v934, -inf
        %945 = vmax.xlane.f32.xlu0 %v944
        %v946 = vpop.xlane.xlu0 %945
        %v947 = vsub.f32 %v931, %v937
        %v948 = vsub.f32 %v932, %v940
        %v949 = vsub.f32 %v933, %v943
        %v950 = vsub.f32 %v934, %v946
        %v951 = vmul.f32 %v947, 1.442695
        %v952 = vpow.pop %v951
        %v953 = vmul.f32 %v948, 1.442695
        %v954 = vpow.pop %v953
        %v955 = vmul.f32 %v949, 1.442695
        %v956 = vpow.pop %v955
        %v957 = vmul.f32 %v950, 1.442695
        %v958 = vpow.pop %v957
        %v959 = vsel %vm732, %v952, 0.0
        %960 = vadd.xlane.f32.xlu0 %v959
        %v961 = vpop.xlane.xlu0 %960
        %v962 = vsel %vm732, %v954, 0.0
        %963 = vadd.xlane.f32.xlu0 %v962
        %v964 = vpop.xlane.xlu0 %963
        %v965 = vsel %vm732, %v956, 0.0
        %966 = vadd.xlane.f32.xlu0 %v965
        %v967 = vpop.xlane.xlu0 %966
        %v968 = vsel %vm732, %v958, 0.0
        %969 = vadd.xlane.f32.xlu0 %v968
        %v970 = vpop.xlane.xlu0 %969
        %v971 = vpack.c.bf16 %v952, %v952
        %v972 = vpack.c.bf16 %v954, %v954
        %v973 = vpack.c.bf16 %v956, %v956
        %v974 = vpack.c.bf16 %v958, %v958
        %975 = vrot.lane.b32.xlu0 %v725, 112
        %v976 = vpop.permute.xlu0 %975
        %v978 = vsel %vm732, %v971, 0
        %vm980 = vcmask 1043456
        %v982 = vsel %vm980, %v976, 0
        %984 = vmatprep.subr.bf16.mxu0 0
        %985 = vmatpush1.bf16.msra.mxu0 %v982
        %986 = vmatprep.subr.bf16.mxu0 0
        %987 = vmatpush1.bf16.msra.mxu0 0
        %988 = vmatprep.subr.bf16.mxu0 0
        %989 = vmatpush1.bf16.msra.mxu0 0
        %990 = vmatprep.subr.bf16.mxu0 0
        %991 = vmatpush1.bf16.msra.mxu0 0
        %992 = vmatprep.subr.bf16.mxu0 0
        %993 = vmatpush1.bf16.msra.mxu0 0
        %994 = vmatprep.subr.bf16.mxu0 0
        %995 = vmatpush1.bf16.msra.mxu0 0
        %996 = vmatprep.subr.bf16.mxu0 0
        %997 = vmatpush1.bf16.msra.mxu0 0
        %998 = vmatprep.subr.bf16.mxu0 0
        %999 = vmatpush1.bf16.msra.mxu0 0
        %1000 = vmatprep.subr.bf16.mxu0 0
        %1001 = vmatpush1.bf16.msra.mxu0 0
        %1002 = vmatprep.subr.bf16.mxu0 0
        %1003 = vmatpush1.bf16.msra.mxu0 0
        %1004 = vmatprep.subr.bf16.mxu0 0
        %1005 = vmatpush1.bf16.msra.mxu0 0
        %1006 = vmatprep.subr.bf16.mxu0 0
        %1007 = vmatpush1.bf16.msra.mxu0 0
        %1008 = vmatprep.subr.bf16.mxu0 0
        %1009 = vmatpush1.bf16.msra.mxu0 0
        %1010 = vmatprep.subr.bf16.mxu0 0
        %1011 = vmatpush1.bf16.msra.mxu0 0
        %1012 = vmatprep.subr.bf16.mxu0 0
        %1013 = vmatpush1.bf16.msra.mxu0 0
        %1014 = vmatprep.subr.bf16.mxu0 0
        %1015 = vmatpush1.bf16.msra.mxu0 0
        %1016 = vmatprep.mubr.bf16.mxu0 0
        %1017 = vmatmul.mubr.bf16.gmra.mrb[0].mxu0 %v978
        %v1018 = vpop.f32.mrb[0].mxu0
        %v1019 = vadd.f32 0.0, %v1018
        %v1020 = vpop.f32.mrb[0].mxu0
        %v1021 = vpop.f32.mrb[0].mxu0
        %v1022 = vpop.f32.mrb[0].mxu0
        %1023 = vdwg.mxu0
        %1024 = vrot.lane.b32.xlu0 %v726, 112
        %v1025 = vpop.permute.xlu0 %1024
        %v1027 = vsel %vm732, %v972, 0
        %v1030 = vsel %vm980, %v1025, 0
        %1032 = vmatprep.subr.bf16.mxu0 0
        %1033 = vmatpush1.bf16.msra.mxu0 %v1030
        %1034 = vmatprep.subr.bf16.mxu0 0
        %1035 = vmatpush1.bf16.msra.mxu0 0
        %1036 = vmatprep.subr.bf16.mxu0 0
        %1037 = vmatpush1.bf16.msra.mxu0 0
        %1038 = vmatprep.subr.bf16.mxu0 0
        %1039 = vmatpush1.bf16.msra.mxu0 0
        %1040 = vmatprep.subr.bf16.mxu0 0
        %1041 = vmatpush1.bf16.msra.mxu0 0
        %1042 = vmatprep.subr.bf16.mxu0 0
        %1043 = vmatpush1.bf16.msra.mxu0 0
        %1044 = vmatprep.subr.bf16.mxu0 0
        %1045 = vmatpush1.bf16.msra.mxu0 0
        %1046 = vmatprep.subr.bf16.mxu0 0
        %1047 = vmatpush1.bf16.msra.mxu0 0
        %1048 = vmatprep.subr.bf16.mxu0 0
        %1049 = vmatpush1.bf16.msra.mxu0 0
        %1050 = vmatprep.subr.bf16.mxu0 0
        %1051 = vmatpush1.bf16.msra.mxu0 0
        %1052 = vmatprep.subr.bf16.mxu0 0
        %1053 = vmatpush1.bf16.msra.mxu0 0
        %1054 = vmatprep.subr.bf16.mxu0 0
        %1055 = vmatpush1.bf16.msra.mxu0 0
        %1056 = vmatprep.subr.bf16.mxu0 0
        %1057 = vmatpush1.bf16.msra.mxu0 0
        %1058 = vmatprep.subr.bf16.mxu0 0
        %1059 = vmatpush1.bf16.msra.mxu0 0
        %1060 = vmatprep.subr.bf16.mxu0 0
        %1061 = vmatpush1.bf16.msra.mxu0 0
        %1062 = vmatprep.subr.bf16.mxu0 0
        %1063 = vmatpush1.bf16.msra.mxu0 0
        %1064 = vmatprep.mubr.bf16.mxu0 0
        %1065 = vmatmul.mubr.bf16.gmra.mrb[0].mxu0 %v1027
        %v1066 = vpop.f32.mrb[0].mxu0
        %v1067 = vadd.f32 0.0, %v1066
        %v1068 = vpop.f32.mrb[0].mxu0
        %v1069 = vpop.f32.mrb[0].mxu0
        %v1070 = vpop.f32.mrb[0].mxu0
        %1071 = vdwg.mxu0
        %1072 = vrot.lane.b32.xlu0 %v727, 112
        %v1073 = vpop.permute.xlu0 %1072
        %v1075 = vsel %vm732, %v973, 0
        %v1078 = vsel %vm980, %v1073, 0
        %1080 = vmatprep.subr.bf16.mxu0 0
        %1081 = vmatpush1.bf16.msra.mxu0 %v1078
        %1082 = vmatprep.subr.bf16.mxu0 0
        %1083 = vmatpush1.bf16.msra.mxu0 0
        %1084 = vmatprep.subr.bf16.mxu0 0
        %1085 = vmatpush1.bf16.msra.mxu0 0
        %1086 = vmatprep.subr.bf16.mxu0 0
        %1087 = vmatpush1.bf16.msra.mxu0 0
        %1088 = vmatprep.subr.bf16.mxu0 0
        %1089 = vmatpush1.bf16.msra.mxu0 0
        %1090 = vmatprep.subr.bf16.mxu0 0
        %1091 = vmatpush1.bf16.msra.mxu0 0
        %1092 = vmatprep.subr.bf16.mxu0 0
        %1093 = vmatpush1.bf16.msra.mxu0 0
        %1094 = vmatprep.subr.bf16.mxu0 0
        %1095 = vmatpush1.bf16.msra.mxu0 0
        %1096 = vmatprep.subr.bf16.mxu0 0
        %1097 = vmatpush1.bf16.msra.mxu0 0
        %1098 = vmatprep.subr.bf16.mxu0 0
        %1099 = vmatpush1.bf16.msra.mxu0 0
        %1100 = vmatprep.subr.bf16.mxu0 0
        %1101 = vmatpush1.bf16.msra.mxu0 0
        %1102 = vmatprep.subr.bf16.mxu0 0
        %1103 = vmatpush1.bf16.msra.mxu0 0
        %1104 = vmatprep.subr.bf16.mxu0 0
        %1105 = vmatpush1.bf16.msra.mxu0 0
        %1106 = vmatprep.subr.bf16.mxu0 0
        %1107 = vmatpush1.bf16.msra.mxu0 0
        %1108 = vmatprep.subr.bf16.mxu0 0
        %1109 = vmatpush1.bf16.msra.mxu0 0
        %1110 = vmatprep.subr.bf16.mxu0 0
        %1111 = vmatpush1.bf16.msra.mxu0 0
        %1112 = vmatprep.mubr.bf16.mxu0 0
        %1113 = vmatmul.mubr.bf16.gmra.mrb[0].mxu0 %v1075
        %v1114 = vpop.f32.mrb[0].mxu0
        %v1115 = vadd.f32 0.0, %v1114
        %v1116 = vpop.f32.mrb[0].mxu0
        %v1117 = vpop.f32.mrb[0].mxu0
        %v1118 = vpop.f32.mrb[0].mxu0
        %1119 = vdwg.mxu0
        %1120 = vrot.lane.b32.xlu0 %v728, 112
        %v1121 = vpop.permute.xlu0 %1120
        %v1123 = vsel %vm732, %v974, 0
        %v1126 = vsel %vm980, %v1121, 0
        %1128 = vmatprep.subr.bf16.mxu0 0
        %1129 = vmatpush1.bf16.msra.mxu0 %v1126
        %1130 = vmatprep.subr.bf16.mxu0 0
        %1131 = vmatpush1.bf16.msra.mxu0 0
        %1132 = vmatprep.subr.bf16.mxu0 0
        %1133 = vmatpush1.bf16.msra.mxu0 0
        %1134 = vmatprep.subr.bf16.mxu0 0
        %1135 = vmatpush1.bf16.msra.mxu0 0
        %1136 = vmatprep.subr.bf16.mxu0 0
        %1137 = vmatpush1.bf16.msra.mxu0 0
        %1138 = vmatprep.subr.bf16.mxu0 0
        %1139 = vmatpush1.bf16.msra.mxu0 0
        %1140 = vmatprep.subr.bf16.mxu0 0
        %1141 = vmatpush1.bf16.msra.mxu0 0
        %1142 = vmatprep.subr.bf16.mxu0 0
        %1143 = vmatpush1.bf16.msra.mxu0 0
        %1144 = vmatprep.subr.bf16.mxu0 0
        %1145 = vmatpush1.bf16.msra.mxu0 0
        %1146 = vmatprep.subr.bf16.mxu0 0
        %1147 = vmatpush1.bf16.msra.mxu0 0
        %1148 = vmatprep.subr.bf16.mxu0 0
        %1149 = vmatpush1.bf16.msra.mxu0 0
        %1150 = vmatprep.subr.bf16.mxu0 0
        %1151 = vmatpush1.bf16.msra.mxu0 0
        %1152 = vmatprep.subr.bf16.mxu0 0
        %1153 = vmatpush1.bf16.msra.mxu0 0
        %1154 = vmatprep.subr.bf16.mxu0 0
        %1155 = vmatpush1.bf16.msra.mxu0 0
        %1156 = vmatprep.subr.bf16.mxu0 0
        %1157 = vmatpush1.bf16.msra.mxu0 0
        %1158 = vmatprep.subr.bf16.mxu0 0
        %1159 = vmatpush1.bf16.msra.mxu0 0
        %1160 = vmatprep.mubr.bf16.mxu0 0
        %1161 = vmatmul.mubr.bf16.gmra.mrb[0].mxu0 %v1123
        %v1162 = vpop.f32.mrb[0].mxu0
        %v1163 = vadd.f32 0.0, %v1162
        %v1164 = vpop.f32.mrb[0].mxu0
        %v1165 = vpop.f32.mrb[0].mxu0
        %v1166 = vpop.f32.mrb[0].mxu0
        %1167 = vdwg.mxu0
        %v1168 = vrcp.pop %v961
        %v1169 = vrcp.pop %v964
        %v1170 = vrcp.pop %v967
        %v1171 = vrcp.pop %v970
        %v1172 = vmul.f32 %v1019, %v1168
        %v1173 = vmul.f32 %v1067, %v1169
        %v1174 = vmul.f32 %v1115, %v1170
        %v1175 = vmul.f32 %v1163, %v1171
        %v1176 = vpack.c.bf16 %v1172, %v1172
        %v1177 = vpack.c.bf16 %v1173, %v1173
        %v1178 = vpack.c.bf16 %v1174, %v1174
        %v1179 = vpack.c.bf16 %v1175, %v1175
        %v1180 = vld [vmem:[%s5] sm:$0xf]
        %v1181 = vld [vmem:[%s5 + $0x4] sm:$0xf]
        %v1182 = vld [vmem:[%s5 + $0x8] sm:$0xf]
        %v1183 = vld [vmem:[%s5 + $0xc] sm:$0xf]
        %v1185 = vsel %vm732, %v1176, 0
        %v1188 = vsel %vm980, %v1180, 0
        %1190 = vmatprep.subr.bf16.mxu0 0
        %1191 = vmatpush1.bf16.msra.mxu0 %v1188
        %1192 = vmatprep.subr.bf16.mxu0 0
        %1193 = vmatpush1.bf16.msra.mxu0 0
        %1194 = vmatprep.subr.bf16.mxu0 0
        %1195 = vmatpush1.bf16.msra.mxu0 0
        %1196 = vmatprep.subr.bf16.mxu0 0
        %1197 = vmatpush1.bf16.msra.mxu0 0
        %1198 = vmatprep.subr.bf16.mxu0 0
        %1199 = vmatpush1.bf16.msra.mxu0 0
        %1200 = vmatprep.subr.bf16.mxu0 0
        %1201 = vmatpush1.bf16.msra.mxu0 0
        %1202 = vmatprep.subr.bf16.mxu0 0
        %1203 = vmatpush1.bf16.msra.mxu0 0
        %1204 = vmatprep.subr.bf16.mxu0 0
        %1205 = vmatpush1.bf16.msra.mxu0 0
        %1206 = vmatprep.subr.bf16.mxu0 0
        %1207 = vmatpush1.bf16.msra.mxu0 0
        %1208 = vmatprep.subr.bf16.mxu0 0
        %1209 = vmatpush1.bf16.msra.mxu0 0
        %1210 = vmatprep.subr.bf16.mxu0 0
        %1211 = vmatpush1.bf16.msra.mxu0 0
        %1212 = vmatprep.subr.bf16.mxu0 0
        %1213 = vmatpush1.bf16.msra.mxu0 0
        %1214 = vmatprep.subr.bf16.mxu0 0
        %1215 = vmatpush1.bf16.msra.mxu0 0
        %1216 = vmatprep.subr.bf16.mxu0 0
        %1217 = vmatpush1.bf16.msra.mxu0 0
        %1218 = vmatprep.subr.bf16.mxu0 0
        %1219 = vmatpush1.bf16.msra.mxu0 0
        %1220 = vmatprep.subr.bf16.mxu0 0
        %1221 = vmatpush1.bf16.msra.mxu0 0
        %1222 = vmatprep.mubr.bf16.mxu0 0
        %1223 = vmatmul.mubr.bf16.gmra.mrb[0].mxu0 %v1185
        %v1224 = vpop.f32.mrb[0].mxu0
        %v1225 = vadd.f32 0.0, %v1224
        %v1226 = vpop.f32.mrb[0].mxu0
        %v1227 = vpop.f32.mrb[0].mxu0
        %v1228 = vpop.f32.mrb[0].mxu0
        %1229 = vdwg.mxu0
        %v1231 = vsel %vm732, %v1177, 0
        %v1234 = vsel %vm980, %v1181, 0
        %1236 = vmatprep.subr.bf16.mxu0 0
        %1237 = vmatpush1.bf16.msra.mxu0 %v1234
        %1238 = vmatprep.subr.bf16.mxu0 0
        %1239 = vmatpush1.bf16.msra.mxu0 0
        %1240 = vmatprep.subr.bf16.mxu0 0
        %1241 = vmatpush1.bf16.msra.mxu0 0
        %1242 = vmatprep.subr.bf16.mxu0 0
        %1243 = vmatpush1.bf16.msra.mxu0 0
        %1244 = vmatprep.subr.bf16.mxu0 0
        %1245 = vmatpush1.bf16.msra.mxu0 0
        %1246 = vmatprep.subr.bf16.mxu0 0
        %1247 = vmatpush1.bf16.msra.mxu0 0
        %1248 = vmatprep.subr.bf16.mxu0 0
        %1249 = vmatpush1.bf16.msra.mxu0 0
        %1250 = vmatprep.subr.bf16.mxu0 0
        %1251 = vmatpush1.bf16.msra.mxu0 0
        %1252 = vmatprep.subr.bf16.mxu0 0
        %1253 = vmatpush1.bf16.msra.mxu0 0
        %1254 = vmatprep.subr.bf16.mxu0 0
        %1255 = vmatpush1.bf16.msra.mxu0 0
        %1256 = vmatprep.subr.bf16.mxu0 0
        %1257 = vmatpush1.bf16.msra.mxu0 0
        %1258 = vmatprep.subr.bf16.mxu0 0
        %1259 = vmatpush1.bf16.msra.mxu0 0
        %1260 = vmatprep.subr.bf16.mxu0 0
        %1261 = vmatpush1.bf16.msra.mxu0 0
        %1262 = vmatprep.subr.bf16.mxu0 0
        %1263 = vmatpush1.bf16.msra.mxu0 0
        %1264 = vmatprep.subr.bf16.mxu0 0
        %1265 = vmatpush1.bf16.msra.mxu0 0
        %1266 = vmatprep.subr.bf16.mxu0 0
        %1267 = vmatpush1.bf16.msra.mxu0 0
        %1268 = vmatprep.mubr.bf16.mxu0 0
        %1269 = vmatmul.mubr.bf16.gmra.mrb[0].mxu0 %v1231
        %v1270 = vpop.f32.mrb[0].mxu0
        %v1271 = vadd.f32 0.0, %v1270
        %v1272 = vpop.f32.mrb[0].mxu0
        %v1273 = vpop.f32.mrb[0].mxu0
        %v1274 = vpop.f32.mrb[0].mxu0
        %1275 = vdwg.mxu0
        %v1277 = vsel %vm732, %v1178, 0
        %v1280 = vsel %vm980, %v1182, 0
        %1282 = vmatprep.subr.bf16.mxu0 0
        %1283 = vmatpush1.bf16.msra.mxu0 %v1280
        %1284 = vmatprep.subr.bf16.mxu0 0
        %1285 = vmatpush1.bf16.msra.mxu0 0
        %1286 = vmatprep.subr.bf16.mxu0 0
        %1287 = vmatpush1.bf16.msra.mxu0 0
        %1288 = vmatprep.subr.bf16.mxu0 0
        %1289 = vmatpush1.bf16.msra.mxu0 0
        %1290 = vmatprep.subr.bf16.mxu0 0
        %1291 = vmatpush1.bf16.msra.mxu0 0
        %1292 = vmatprep.subr.bf16.mxu0 0
        %1293 = vmatpush1.bf16.msra.mxu0 0
        %1294 = vmatprep.subr.bf16.mxu0 0
        %1295 = vmatpush1.bf16.msra.mxu0 0
        %1296 = vmatprep.subr.bf16.mxu0 0
        %1297 = vmatpush1.bf16.msra.mxu0 0
        %1298 = vmatprep.subr.bf16.mxu0 0
        %1299 = vmatpush1.bf16.msra.mxu0 0
        %1300 = vmatprep.subr.bf16.mxu0 0
        %1301 = vmatpush1.bf16.msra.mxu0 0
        %1302 = vmatprep.subr.bf16.mxu0 0
        %1303 = vmatpush1.bf16.msra.mxu0 0
        %1304 = vmatprep.subr.bf16.mxu0 0
        %1305 = vmatpush1.bf16.msra.mxu0 0
        %1306 = vmatprep.subr.bf16.mxu0 0
        %1307 = vmatpush1.bf16.msra.mxu0 0
        %1308 = vmatprep.subr.bf16.mxu0 0
        %1309 = vmatpush1.bf16.msra.mxu0 0
        %1310 = vmatprep.subr.bf16.mxu0 0
        %1311 = vmatpush1.bf16.msra.mxu0 0
        %1312 = vmatprep.subr.bf16.mxu0 0
        %1313 = vmatpush1.bf16.msra.mxu0 0
        %1314 = vmatprep.mubr.bf16.mxu0 0
        %1315 = vmatmul.mubr.bf16.gmra.mrb[0].mxu0 %v1277
        %v1316 = vpop.f32.mrb[0].mxu0
        %v1317 = vadd.f32 0.0, %v1316
        %v1318 = vpop.f32.mrb[0].mxu0
        %v1319 = vpop.f32.mrb[0].mxu0
        %v1320 = vpop.f32.mrb[0].mxu0
        %1321 = vdwg.mxu0
        %v1323 = vsel %vm732, %v1179, 0
        %v1326 = vsel %vm980, %v1183, 0
        %1328 = vmatprep.subr.bf16.mxu0 0
        %1329 = vmatpush1.bf16.msra.mxu0 %v1326
        %1330 = vmatprep.subr.bf16.mxu0 0
        %1331 = vmatpush1.bf16.msra.mxu0 0
        %1332 = vmatprep.subr.bf16.mxu0 0
        %1333 = vmatpush1.bf16.msra.mxu0 0
        %1334 = vmatprep.subr.bf16.mxu0 0
        %1335 = vmatpush1.bf16.msra.mxu0 0
        %1336 = vmatprep.subr.bf16.mxu0 0
        %1337 = vmatpush1.bf16.msra.mxu0 0
        %1338 = vmatprep.subr.bf16.mxu0 0
        %1339 = vmatpush1.bf16.msra.mxu0 0
        %1340 = vmatprep.subr.bf16.mxu0 0
        %1341 = vmatpush1.bf16.msra.mxu0 0
        %1342 = vmatprep.subr.bf16.mxu0 0
        %1343 = vmatpush1.bf16.msra.mxu0 0
        %1344 = vmatprep.subr.bf16.mxu0 0
        %1345 = vmatpush1.bf16.msra.mxu0 0
        %1346 = vmatprep.subr.bf16.mxu0 0
        %1347 = vmatpush1.bf16.msra.mxu0 0
        %1348 = vmatprep.subr.bf16.mxu0 0
        %1349 = vmatpush1.bf16.msra.mxu0 0
        %1350 = vmatprep.subr.bf16.mxu0 0
        %1351 = vmatpush1.bf16.msra.mxu0 0
        %1352 = vmatprep.subr.bf16.mxu0 0
        %1353 = vmatpush1.bf16.msra.mxu0 0
        %1354 = vmatprep.subr.bf16.mxu0 0
        %1355 = vmatpush1.bf16.msra.mxu0 0
        %1356 = vmatprep.subr.bf16.mxu0 0
        %1357 = vmatpush1.bf16.msra.mxu0 0
        %1358 = vmatprep.subr.bf16.mxu0 0
        %1359 = vmatpush1.bf16.msra.mxu0 0
        %1360 = vmatprep.mubr.bf16.mxu0 0
        %1361 = vmatmul.mubr.bf16.gmra.mrb[0].mxu0 %v1323
        %v1362 = vpop.f32.mrb[0].mxu0
        %v1363 = vadd.f32 0.0, %v1362
        %v1364 = vpop.f32.mrb[0].mxu0
        %v1365 = vpop.f32.mrb[0].mxu0
        %v1366 = vpop.f32.mrb[0].mxu0
        %1367 = vdwg.mxu0
        %v1368 = vsel %vm440, %v1225, 0.0
        %v1369 = vsel %vm440, %v1271, 0.0
        %v1370 = vadd.f32 %v1368, %v1369
        %v1371 = vsel %vm440, %v1317, 0.0
        %v1372 = vadd.f32 %v1370, %v1371
        %v1373 = vsel %vm440, %v1363, 0.0
        %v1374 = vadd.f32 %v1372, %v1373
        %v1375 = vld [vmem:[%s6] sm:$0x1]
        %v1377 = vlaneseq
        %v1378 = vshrl.u32 %v1377, 7
        %v1379 = vsub.s32 0, %v1378
        %v1380 = vrot.slane %v1375, %v1379
        %v1382 = vadd.f32 %v1374, %v1380
        %v1383 = vadd.f32 %v437, %v1382
        %v1384 = vld [vmem:[%s7] sm:$0x1]
        %v1385 = vld [vmem:[%s8] sm:$0x1]
        %v1386 = vsel %vm440, %v1383, 0.0
        %1387 = vadd.xlane.f32.xlu0 %v1386
        %v1388 = vpop.xlane.xlu0 %1387
        %v1389 = vmul.f32 %v1388, %v444
        %v1390 = vsub.f32 %v1383, %v1389
        %v1391 = vmul.f32 %v1390, %v1390
        %v1392 = vsel %vm440, %v1391, 0.0
        %1393 = vadd.xlane.f32.xlu0 %v1392
        %v1394 = vpop.xlane.xlu0 %1393
        %v1395 = vmul.f32 %v1394, %v444
        %v1396 = vadd.f32 %v1395, 1e-05
        %v1397 = vrsqrt.pop %v1396
        %v1398 = vmul.f32 %v1390, %v1397
        %v1400 = vlaneseq
        %v1401 = vshrl.u32 %v1400, 7
        %v1402 = vsub.s32 0, %v1401
        %v1403 = vrot.slane %v1384, %v1402
        %v1405 = vmul.f32 %v1398, %v1403
        %v1407 = vlaneseq
        %v1408 = vshrl.u32 %v1407, 7
        %v1409 = vsub.s32 0, %v1408
        %v1410 = vrot.slane %v1385, %v1409
        %v1412 = vadd.f32 %v1405, %v1410
        %v1413 = vpack.c.bf16 %v1412, %v1412
        %v1414 = vld [vmem:[%s9] sm:$0xf]
        %v1415 = vld [vmem:[%s9 + $0x4] sm:$0xf]
        %v1416 = vld [vmem:[%s9 + $0x8] sm:$0xf]
        %v1417 = vld [vmem:[%s9 + $0xc] sm:$0xf]
        %v1418 = vld [vmem:[%s10] sm:$0x1]
        %v1420 = vlaneseq
        %v1421 = vshrl.u32 %v1420, 7
        %v1422 = vsub.s32 0, %v1421
        %v1423 = vrot.slane %v1418, %v1422
        %v1429 = vunpack.c.l.b16 %v1414
        %v1430 = vunpack.c.l.b16 %v1415
        %v1431 = vunpack.c.l.b16 %v1416
        %v1432 = vunpack.c.l.b16 %v1417
        %v1433 = vpack.c.b16 %v1430, %v1429
        %v1434 = vpack.c.b16 %v1432, %v1431
        %v1438 = vsel %vm440, %v1413, 0
        %1440 = vmatprep.subr.bf16.mxu0 0
        %1441 = vmatpush1.bf16.msra.mxu0 %v1433
        %1442 = vmatprep.subr.bf16.mxu0 0
        %1443 = vmatpush1.bf16.msra.mxu0 %v1434
        %1444 = vmatprep.subr.bf16.mxu0 0
        %1445 = vmatpush1.bf16.msra.mxu0 0
        %1446 = vmatprep.subr.bf16.mxu0 0
        %1447 = vmatpush1.bf16.msra.mxu0 0
        %1448 = vmatprep.subr.bf16.mxu0 0
        %1449 = vmatpush1.bf16.msra.mxu0 0
        %1450 = vmatprep.subr.bf16.mxu0 0
        %1451 = vmatpush1.bf16.msra.mxu0 0
        %1452 = vmatprep.subr.bf16.mxu0 0
        %1453 = vmatpush1.bf16.msra.mxu0 0
        %1454 = vmatprep.subr.bf16.mxu0 0
        %1455 = vmatpush1.bf16.msra.mxu0 0
        %1456 = vmatprep.subr.bf16.mxu0 0
        %1457 = vmatpush1.bf16.msra.mxu0 0
        %1458 = vmatprep.subr.bf16.mxu0 0
        %1459 = vmatpush1.bf16.msra.mxu0 0
        %1460 = vmatprep.subr.bf16.mxu0 0
        %1461 = vmatpush1.bf16.msra.mxu0 0
        %1462 = vmatprep.subr.bf16.mxu0 0
        %1463 = vmatpush1.bf16.msra.mxu0 0
        %1464 = vmatprep.subr.bf16.mxu0 0
        %1465 = vmatpush1.bf16.msra.mxu0 0
        %1466 = vmatprep.subr.bf16.mxu0 0
        %1467 = vmatpush1.bf16.msra.mxu0 0
        %1468 = vmatprep.subr.bf16.mxu0 0
        %1469 = vmatpush1.bf16.msra.mxu0 0
        %1470 = vmatprep.subr.bf16.mxu0 0
        %1471 = vmatpush1.bf16.msra.mxu0 0
        %1472 = vmatprep.mubr.bf16.mxu0 0
        %1473 = vmatmul.mubr.bf16.gmra.mrb[0].mxu0 %v1438
        %v1474 = vpop.f32.mrb[0].mxu0
        %v1475 = vadd.f32 %v1423, %v1474
        %v1476 = vpop.f32.mrb[0].mxu0
        %v1477 = vpop.f32.mrb[0].mxu0
        %v1478 = vpop.f32.mrb[0].mxu0
        %1479 = vdwg.mxu0
        %v1480 = vmul.f32 %v1475, 0.5
        %v1481 = vmul.f32 %v1475, 0.044715
        %v1482 = vmul.f32 %v1481, %v1475
        %v1483 = vmul.f32 %v1482, %v1475
        %v1484 = vadd.f32 %v1475, %v1483
        %v1485 = vmul.f32 %v1484, 0.7978846
        %v1486 = vtanh.pop %v1485
        %v1487 = vadd.f32 %v1486, 1.0
        %v1488 = vmul.f32 %v1480, %v1487
        %v1489 = vpack.c.bf16 %v1488, %v1488
        %v1490 = vld [vmem:[%s11] sm:$0xf]
        %v1491 = vld [vmem:[%s11 + $0x4] sm:$0xf]
        %v1492 = vld [vmem:[%s11 + $0x8] sm:$0xf]
        %v1493 = vld [vmem:[%s11 + $0xc] sm:$0xf]
        %v1494 = vld [vmem:[%s11 + $0x10] sm:$0xf]
        %v1495 = vld [vmem:[%s11 + $0x14] sm:$0xf]
        %v1496 = vld [vmem:[%s11 + $0x18] sm:$0xf]
        %v1497 = vld [vmem:[%s11 + $0x1c] sm:$0xf]
        %v1498 = vld [vmem:[%s11 + $0x20] sm:$0xf]
        %v1499 = vld [vmem:[%s11 + $0x24] sm:$0xf]
        %v1500 = vld [vmem:[%s11 + $0x28] sm:$0xf]
        %v1501 = vld [vmem:[%s11 + $0x2c] sm:$0xf]
        %v1502 = vld [vmem:[%s11 + $0x30] sm:$0xf]
        %v1503 = vld [vmem:[%s11 + $0x34] sm:$0xf]
        %v1504 = vld [vmem:[%s11 + $0x38] sm:$0xf]
        %v1505 = vld [vmem:[%s11 + $0x3c] sm:$0xf]
        %v1506 = vld [vmem:[%s12] sm:$0x1]
        %v1508 = vlaneseq
        %v1509 = vshrl.u32 %v1508, 7
        %v1510 = vsub.s32 0, %v1509
        %v1511 = vrot.slane %v1506, %v1510
        %v1529 = vunpack.c.l.b16 %v1490
        %v1530 = vunpack.c.l.b16 %v1491
        %v1531 = vunpack.c.l.b16 %v1492
        %v1532 = vunpack.c.l.b16 %v1493
        %v1533 = vunpack.c.l.b16 %v1494
        %v1534 = vunpack.c.l.b16 %v1495
        %v1535 = vunpack.c.l.b16 %v1496
        %v1536 = vunpack.c.l.b16 %v1497
        %v1537 = vunpack.c.l.b16 %v1498
        %v1538 = vunpack.c.l.b16 %v1499
        %v1539 = vunpack.c.l.b16 %v1500
        %v1540 = vunpack.c.l.b16 %v1501
        %v1541 = vunpack.c.l.b16 %v1502
        %v1542 = vunpack.c.l.b16 %v1503
        %v1543 = vunpack.c.l.b16 %v1504
        %v1544 = vunpack.c.l.b16 %v1505
        %v1545 = vpack.c.b16 %v1530, %v1529
        %v1546 = vpack.c.b16 %v1532, %v1531
        %v1547 = vpack.c.b16 %v1534, %v1533
        %v1548 = vpack.c.b16 %v1536, %v1535
        %v1549 = vpack.c.b16 %v1538, %v1537
        %v1550 = vpack.c.b16 %v1540, %v1539
        %v1551 = vpack.c.b16 %v1542, %v1541
        %v1552 = vpack.c.b16 %v1544, %v1543
        %1561 = vmatprep.subr.bf16.mxu0 0
        %1562 = vmatpush1.bf16.msra.mxu0 %v1545
        %1563 = vmatprep.subr.bf16.mxu0 0
        %1564 = vmatpush1.bf16.msra.mxu0 %v1546
        %1565 = vmatprep.subr.bf16.mxu0 0
        %1566 = vmatpush1.bf16.msra.mxu0 %v1547
        %1567 = vmatprep.subr.bf16.mxu0 0
        %1568 = vmatpush1.bf16.msra.mxu0 %v1548
        %1569 = vmatprep.subr.bf16.mxu0 0
        %1570 = vmatpush1.bf16.msra.mxu0 %v1549
        %1571 = vmatprep.subr.bf16.mxu0 0
        %1572 = vmatpush1.bf16.msra.mxu0 %v1550
        %1573 = vmatprep.subr.bf16.mxu0 0
        %1574 = vmatpush1.bf16.msra.mxu0 %v1551
        %1575 = vmatprep.subr.bf16.mxu0 0
        %1576 = vmatpush1.bf16.msra.mxu0 %v1552
        %1577 = vmatprep.subr.bf16.mxu0 0
        %1578 = vmatpush1.bf16.msra.mxu0 0
        %1579 = vmatprep.subr.bf16.mxu0 0
        %1580 = vmatpush1.bf16.msra.mxu0 0
        %1581 = vmatprep.subr.bf16.mxu0 0
        %1582 = vmatpush1.bf16.msra.mxu0 0
        %1583 = vmatprep.subr.bf16.mxu0 0
        %1584 = vmatpush1.bf16.msra.mxu0 0
        %1585 = vmatprep.subr.bf16.mxu0 0
        %1586 = vmatpush1.bf16.msra.mxu0 0
        %1587 = vmatprep.subr.bf16.mxu0 0
        %1588 = vmatpush1.bf16.msra.mxu0 0
        %1589 = vmatprep.subr.bf16.mxu0 0
        %1590 = vmatpush1.bf16.msra.mxu0 0
        %1591 = vmatprep.subr.bf16.mxu0 0
        %1592 = vmatpush1.bf16.msra.mxu0 0
        %1593 = vmatprep.mubr.bf16.mxu0 0
        %1594 = vmatmul.mubr.bf16.gmra.mrb[0].mxu0 %v1489
        %v1595 = vpop.f32.mrb[0].mxu0
        %v1596 = vadd.f32 %v1511, %v1595
        %v1597 = vpop.f32.mrb[0].mxu0
        %v1598 = vpop.f32.mrb[0].mxu0
        %v1599 = vpop.f32.mrb[0].mxu0
        %1600 = vdwg.mxu0
        %v1601 = vadd.f32 %v1383, %v1596
        %1602 = vst.msk [vmem:[%s431] sm:$0xff] %vm440, %v1601
        %s1603 = sand.u32 %s313, 1
        %s1604 = scalar_lea.sflag [#allocation3], %s1603
        %s1605 = sand.u32 %s313, 1
        %s1606 = smul.addr %s1605, 8
        %s1607 = scalar_lea.vmem [#allocation2], %s1606
        // Predicated region
        $region73: #{tpu_custom_call.1} parent=71 // pred_check
          %p1608 = pneg %p323
        $region74: #{tpu_custom_call.1} parent=71 // pred_check_branch
          %1610 = sbr.rel (%p1608) target = $region76
        $region75: #{tpu_custom_call.1} parent=71 // pred_region
          %s1612 = ssub.s32 128, 128
          %1613 = vsyncadd %s1604, %s1612
          %s1614 = smul.addr %s27, 128
          %s1615 = scalar_lea.hbm %s13, %s1614
          %s1617 = sshll.u32 %s1607, 4
          %s1618 = int_to_ptr.vmem [resolvable:$true] %s1617
          %1620 = dma.vmem_to_hbm [thread:$0]  %s1618, 128, %s1615, %s1604
        $region76: #{tpu_custom_call.1} parent=71 // pred_fallthru
          _
      $region72: #{tpu_custom_call.1} parent=5 // pred_fallthru
        _
      %p1621 = scmp.le.s32.totalorder 2, %s22
      // Predicated region
      $region77: #{tpu_custom_call.1} parent=5 // pred_check
        %p1622 = pneg %p1621
      $region78: #{tpu_custom_call.1} parent=5 // pred_check_branch
        %1624 = sbr.rel (%p1622) target = $region80
      $region79: #{tpu_custom_call.1} parent=5 // pred_region
        %s1625 = ssub.s32 %s22, 2
        // Predicated region
        $region81: #{tpu_custom_call.1} parent=79 // pred_check
          %p1626 = pneg %p329
        $region82: #{tpu_custom_call.1} parent=79 // pred_check_branch
          %1628 = sbr.rel (%p1626) target = $region84
        $region83: #{tpu_custom_call.1} parent=79 // pred_region
          %s1629 = sand.u32 %s314, 1
          %s1630 = scalar_lea.sflag [#allocation3], %s1629
          %s1631 = sand.u32 %s314, 1
          %s1632 = smul.addr %s1631, 8
          %s1633 = scalar_lea.vmem [#allocation2], %s1632
          %1634 = dma.done %s1630, 128
        $region84: #{tpu_custom_call.1} parent=79 // pred_fallthru
          _
      $region80: #{tpu_custom_call.1} parent=5 // pred_fallthru
        _
    $region6: #{tpu_custom_call.1} parent=1 // loop_footer
      %s26 = sadd.s32 1, %s22
    $region7: #{tpu_custom_call.1} parent=1 // loop_footer_branch
      %21 = sbr.rel target = $region3
    $region8: #{tpu_custom_call.1} parent=1 // loop_exit
      _
    %1635 = vsyncpa [#allocation3], 1
    %s1636 = scalar_lea.sflag [#allocation3], 1
    %1637 = vsyncpa %s1636, 1

</llo_original>
